<compile_context>
chip_gen: v6e
topology: v6e:2x2x1
jax: 0.10.0
libtpu: 0.0.40
codegen_flags: <defaults>
</compile_context>

<pallas_src>
import math
from types import SimpleNamespace

import numpy as np
import jax
import jax.numpy as jnp
from jax.experimental import pallas as pl
from jax.experimental.pallas import tpu as pltpu

F32 = jnp.float32
_VMEM_LIMIT = 32 * 1024 * 1024   # safe on v5e (128M phys), v6e (128M), v7x (64M)


def _round_up(x, m):
    return ((x + m - 1) // m) * m


def _full_spec(a):
    """Constant-index BlockSpec covering the whole (small) array (weights etc.)."""
    nd = a.ndim
    return pl.BlockSpec(a.shape, lambda i, _nd=nd: (0,) * _nd)


# --------------------------------------------------------------------------
# Pallas kernels
# --------------------------------------------------------------------------

def _memory_update_kernel(delta_ref, x_ref, tw_ref, tb_ref, wx_ref, wt_ref,
                          b_ref, o_ref):
    """Fused message time-encode + nn.RNNCell(tanh) memory update.

    h' = tanh([src_mem, dst_mem, ef] @ Wx + cos(dt*w+b) @ Wt + b)
    where Wx = [W_ih_src^T + W_hh^T ; W_ih_dst^T ; W_ih_ef^T] (prebuilt), so the
    whole non-time part is a single MXU contraction; cos() runs on the EUP.
    """
    dte = jnp.cos(delta_ref[...] * tw_ref[...] + tb_ref[...])           # (tile, te)
    pre = (
        jnp.dot(x_ref[...], wx_ref[...], preferred_element_type=jnp.float32)
        + jnp.dot(dte, wt_ref[...], preferred_element_type=jnp.float32)
        + b_ref[...]
    )
    o_ref[...] = jnp.tanh(pre)


def _make_aggregate_kernel(n_neighbors):
    """Fused edge time-encode + linear_1 + weighted neighbor sum + relu + linear_2.

    Inputs are neighbor-major: dt/nef/ew are (K, tile_M, feat) blocks; nef is the
    lane-concatenation [neighbor_emb | edge_feat].  The K loop is VPU/EUP only;
    all MXU dots are hoisted out using
        sum_k w_k * (x_k @ W1 + b1) == (sum_k w_k x_k) @ W1 + (sum_k w_k) * b1
    (this matches the reference, which applies ReLU AFTER the weighted sum).
    The constant source-time-embedding term of linear_2 is folded into b2.
    """
    def kernel(dt_ref, nef_ref, ew_ref, sf_ref, tw_ref, tb_ref,
               w1ac_ref, w1b_ref, b1_ref, w2a_ref, w2b_ref, b2_ref, o_ref):
        m_rows = dt_ref.shape[1]
        te = tw_ref.shape[1]
        # hoist the (1,te)->(tile,te) broadcasts out of the unrolled loop
        tw = jnp.broadcast_to(tw_ref[...], (m_rows, te))
        tb = jnp.broadcast_to(tb_ref[...], (m_rows, te))

        w0 = ew_ref[0]                                                   # (tile, 1)
        acc_nef = nef_ref[0] * w0                                        # (tile, emb+ef)
        acc_te = jnp.cos(dt_ref[0] * tw + tb) * w0                       # (tile, te)
        acc_w = w0                                                       # (tile, 1)
        for k in range(1, n_neighbors):                                  # static unroll, VPU/EUP only
            wk = ew_ref[k]
            acc_nef = acc_nef + nef_ref[k] * wk
            acc_te = acc_te + jnp.cos(dt_ref[k] * tw + tb) * wk
            acc_w = acc_w + wk

        pre1 = (
            jnp.dot(acc_nef, w1ac_ref[...], preferred_element_type=jnp.float32)
            + jnp.dot(acc_te, w1b_ref[...], preferred_element_type=jnp.float32)
            + acc_w * b1_ref[...]
        )
        neighbors_sum = jnp.maximum(pre1, 0.0)                           # relu(weighted sum)
        o_ref[...] = (
            jnp.dot(neighbors_sum, w2a_ref[...], preferred_element_type=jnp.float32)
            + jnp.dot(sf_ref[...], w2b_ref[...], preferred_element_type=jnp.float32)
            + b2_ref[...]
        )
    return kernel


def _mlp_kernel(x_ref, w1_ref, b1_ref, w2_ref, b2_ref, w3_ref, b3_ref, o_ref):
    # Linear->ReLU->Linear->ReLU->Linear->sigmoid (dropout = identity, eval mode)
    h1 = jnp.maximum(
        jnp.dot(x_ref[...], w1_ref[...], preferred_element_type=jnp.float32)
        + b1_ref[...], 0.0)
    h2 = jnp.maximum(
        jnp.dot(h1, w2_ref[...], preferred_element_type=jnp.float32)
        + b2_ref[...], 0.0)
    # final 10 -> 1 projection as VPU multiply + lane reduce; stable sigmoid (EUP).
    h3 = jnp.sum(h2 * w3_ref[...], axis=-1, keepdims=True) + b3_ref[...]
    # TODO(synk): lane-dense (1, tile) output store (in-kernel transpose) would
    # avoid masked 1-lane stores; kept the known-good (tile, 1) layout since the
    # read path dominates this head.
    o_ref[...] = 0.5 * (jnp.tanh(0.5 * h3) + 1.0)


# --------------------------------------------------------------------------
# Pallas-call wrappers (row-tiled parallel grids)
# --------------------------------------------------------------------------

def _memory_update_call(delta, x, p, *, row_tile=256):
    b, xw = x.shape
    mem = p['rnn_w_x'].shape[1]
    tile = min(row_tile, _round_up(b, 8))
    b_pad = _round_up(b, tile)
    if b_pad != b:
        delta = jnp.pad(delta, ((0, b_pad - b), (0, 0)))
        x = jnp.pad(x, ((0, b_pad - b), (0, 0)))
    out = pl.pallas_call(
        _memory_update_kernel,
        out_shape=jax.ShapeDtypeStruct((b_pad, mem), F32),
        grid=(b_pad // tile,),
        in_specs=[
            pl.BlockSpec((tile, 1), lambda i: (i, 0)),
            pl.BlockSpec((tile, xw), lambda i: (i, 0)),
            _full_spec(p['te_w_row']), _full_spec(p['te_b_row']),
            _full_spec(p['rnn_w_x']), _full_spec(p['rnn_w_dte']),
            _full_spec(p['rnn_b']),
        ],
        out_specs=pl.BlockSpec((tile, mem), lambda i: (i, 0)),
        compiler_params=pltpu.CompilerParams(
            dimension_semantics=("parallel",),
            vmem_limit_bytes=_VMEM_LIMIT),
    )(delta, x, p['te_w_row'], p['te_b_row'],
      p['rnn_w_x'], p['rnn_w_dte'], p['rnn_b'])
    return out[:b]


def _aggregate_call(dt, nef, ew, sf, te_w, te_b, lp, *, row_tile=256):
    n_k, m, nef_w = nef.shape
    sf_w = sf.shape[1]
    emb = lp['w2a'].shape[1]
    tile = min(row_tile, _round_up(m, 8))
    m_pad = _round_up(m, tile)
    if m_pad != m:
        pad3 = ((0, 0), (0, m_pad - m), (0, 0))
        dt = jnp.pad(dt, pad3)
        nef = jnp.pad(nef, pad3)
        ew = jnp.pad(ew, pad3)
        sf = jnp.pad(sf, ((0, m_pad - m), (0, 0)))
    out = pl.pallas_call(
        _make_aggregate_kernel(n_k),
        out_shape=jax.ShapeDtypeStruct((m_pad, emb), F32),
        grid=(m_pad // tile,),
        in_specs=[
            pl.BlockSpec((n_k, tile, 1), lambda i: (0, i, 0)),
            pl.BlockSpec((n_k, tile, nef_w), lambda i: (0, i, 0)),
            pl.BlockSpec((n_k, tile, 1), lambda i: (0, i, 0)),
            pl.BlockSpec((tile, sf_w), lambda i: (i, 0)),
            _full_spec(te_w), _full_spec(te_b),
            _full_spec(lp['w1ac']), _full_spec(lp['w1b']), _full_spec(lp['b1']),
            _full_spec(lp['w2a']), _full_spec(lp['w2b']), _full_spec(lp['b2']),
        ],
        out_specs=pl.BlockSpec((tile, emb), lambda i: (i, 0)),
        compiler_params=pltpu.CompilerParams(
            dimension_semantics=("parallel",),
            vmem_limit_bytes=_VMEM_LIMIT),
    )(dt, nef, ew, sf, te_w, te_b,
      lp['w1ac'], lp['w1b'], lp['b1'], lp['w2a'], lp['w2b'], lp['b2'])
    return out[:m]


def mlp_head(x, p, *, row_tile=256):
    """MLP head over all rows, gridded over row tiles (parallel across TCs)."""
    n, emb = x.shape
    tile = min(row_tile, _round_up(n, 8))
    n_pad = _round_up(n, tile)
    if n_pad != n:
        x = jnp.pad(x, ((0, n_pad - n), (0, 0)))
    out = pl.pallas_call(
        _mlp_kernel,
        out_shape=jax.ShapeDtypeStruct((n_pad, 1), F32),
        grid=(n_pad // tile,),
        in_specs=[
            pl.BlockSpec((tile, emb), lambda i: (i, 0)),
            _full_spec(p['mlp_w1']), _full_spec(p['mlp_b1']),
            _full_spec(p['mlp_w2']), _full_spec(p['mlp_b2']),
            _full_spec(p['mlp_w3']), _full_spec(p['mlp_b3']),
        ],
        out_specs=pl.BlockSpec((tile, 1), lambda i: (i, 0)),
        compiler_params=pltpu.CompilerParams(
            dimension_semantics=("parallel",),
            vmem_limit_bytes=_VMEM_LIMIT),
    )(x, p['mlp_w1'], p['mlp_b1'], p['mlp_w2'], p['mlp_b2'],
      p['mlp_w3'], p['mlp_b3'])
    return out[:n]


# --------------------------------------------------------------------------
# One batch step (inside lax.scan) and the single jitted device forward
# --------------------------------------------------------------------------

def _batch_step(params, node_mem, last_updated, edge_features, tnf, batch):
    """One TGN batch: message build + memory update + layered embedding.

    node_mem / last_updated carry one extra sentinel row (index n_nodes) that
    absorbs scatter writes for duplicate-source and padded batch rows, keeping
    every shape static across batches.
    """
    src = batch['src']
    dst = batch['dst']
    eidx = batch['eidx']
    ts = batch['ts']
    scatter_idx = batch['scatter_idx']
    leaf_nodes = batch['leaf']
    levels = batch['levels']

    # ---- get_message + update_memory (fused time-encode + RNNCell kernel) ----
    src_mem = node_mem[src]                               # (B, mem)
    dst_mem = node_mem[dst]                               # (B, mem)
    ef_msg = edge_features[eidx]                          # (B, ef)
    delta = (ts - last_updated[src])[:, None]             # (B, 1) pre-update state
    x_msg = jnp.concatenate([src_mem, dst_mem, ef_msg], axis=1)   # (B, 2*mem+ef)
    new_mem = _memory_update_call(delta, x_msg, params)
    # TODO(synk): for very large n_nodes this scatter/gather could move in-kernel
    # via PrefetchScalarGridSpec + input_output_aliases; inside the scan it is a
    # single fused XLA scatter and is negligible at these sizes.
    node_mem = node_mem.at[scatter_idx].set(new_mem)
    last_updated = last_updated.at[scatter_idx].set(ts)

    # ---- compute_embedding (one fused aggregate kernel per layer) ----
    emb_size = tnf.shape[1]
    emb = node_mem[leaf_nodes] + tnf[leaf_nodes]          # layer-0 features (k-major)
    n_layers = len(levels)
    for depth in range(n_layers - 1, -1, -1):
        lv = levels[depth]
        layer_idx = n_layers - 1 - depth
        n_k, n_rows = lv['ew'].shape[0], lv['ew'].shape[1]
        src_feat = node_mem[lv['nodes']] + tnf[lv['nodes']]            # (M, emb)
        neigh_feat = emb.reshape(n_k, n_rows, emb_size)                # (K, M, emb)
        ef_n = edge_features[lv['eidx']].reshape(n_k, n_rows, -1)      # (K, M, ef)
        nef = jnp.concatenate([neigh_feat, ef_n], axis=-1)             # lane-dense stream
        emb = _aggregate_call(lv['deltas'], nef, lv['ew'], src_feat,
                              params['te_w_row'], params['te_b_row'],
                              params['layers'][layer_idx])
    return node_mem, last_updated, emb


def _forward_device(params, node_mem, last_updated, edge_features, tnf, batches):
    """Scan the whole event stream on-device, then run the MLP head once."""
    def step(carry, batch):
        nm, lu = carry
        nm, lu, emb = _batch_step(params, nm, lu, edge_features, tnf, batch)
        return (nm, lu), emb

    (node_mem, last_updated), embs = jax.lax.scan(
        step, (node_mem, last_updated), batches)
    emb_all = embs.reshape(-1, embs.shape[-1])            # (n_batch*B, emb)
    pre_class = mlp_head(emb_all, params)                 # Pallas kernel (gridded)
    return node_mem, last_updated, pre_class.reshape(-1)


# --------------------------------------------------------------------------
# Host-side glue: neighbor finder, parameter init, TGN module
# --------------------------------------------------------------------------

class SimpleNeighborFinder:
    """Temporal neighbor finder.
    # TODO(synk): the reference `get_neighbor_finder` is undefined external code
    # (uniform random temporal sampling); here we deterministically take the
    # most-recent K neighbors before the query timestamp, zero-padded.
    """

    def __init__(self, sources, destinations, timestamps, edge_idxs, edge_weights, n_nodes):
        self.adj = [[] for _ in range(n_nodes)]
        for s, d, t, e, w in zip(sources, destinations, timestamps, edge_idxs, edge_weights):
            self.adj[int(s)].append((int(d), int(e), float(t), float(w)))
            self.adj[int(d)].append((int(s), int(e), float(t), float(w)))
        for node in range(n_nodes):
            self.adj[node].sort(key=lambda x: x[2])

    def get_temporal_neighbor(self, src_nodes, timestamps, n_neighbors):
        B, K = len(src_nodes), n_neighbors
        neighbors = np.zeros((B, K), dtype=np.int64)
        eidx = np.zeros((B, K), dtype=np.int64)
        etimes = np.zeros((B, K), dtype=np.float32)
        eweights = np.zeros((B, K), dtype=np.float32)
        for i, (node, t) in enumerate(zip(src_nodes, timestamps)):
            cand = [x for x in self.adj[int(node)] if x[2] < float(t)][-K:]
            for j, (nb, e, et, w) in enumerate(cand):
                neighbors[i, j] = nb
                eidx[i, j] = e
                etimes[i, j] = et
                eweights[i, j] = w
        return neighbors, eidx, etimes, eweights


def _linear_params(key, out_f, in_f):
    k1, k2 = jax.random.split(key)
    bound = 1.0 / math.sqrt(in_f)
    w = jax.random.uniform(k1, (out_f, in_f), F32, -bound, bound)
    b = jax.random.uniform(k2, (out_f,), F32, -bound, bound)
    return w, b


class TGNPallas:
    def __init__(self, n_nodes, args):
        self.args = args
        self.n_layers = args.n_layers
        self.n_neighbors = args.n_neighbors
        self.BATCH_SIZE = args.batch_size
        self.emb_size = args.emb_size
        self.hid_size = args.hid_size
        self.mem_size = args.mem_size
        self.te_size = args.time_encoding_size
        self.ef_size = args.edge_features_size
        self.n_nodes = n_nodes
        self.message_size = self.mem_size * 2 + self.te_size + self.ef_size

        key = jax.random.PRNGKey(0)
        keys = jax.random.split(key, max(16, 9 + 2 * self.n_layers))

        # TimeEncode (matches PyTorch init exactly)
        te_w = jnp.asarray(1.0 / 10 ** np.linspace(0, 9, self.te_size), F32)
        te_b = jnp.zeros((self.te_size,), F32)

        # nn.RNNCell(message_size -> mem_size)
        rb = 1.0 / math.sqrt(self.mem_size)
        rnn_w_ih = jax.random.uniform(keys[0], (self.mem_size, self.message_size), F32, -rb, rb)
        rnn_w_hh = jax.random.uniform(keys[1], (self.mem_size, self.mem_size), F32, -rb, rb)
        rnn_b_ih = jax.random.uniform(keys[2], (self.mem_size,), F32, -rb, rb)
        rnn_b_hh = jax.random.uniform(keys[3], (self.mem_size,), F32, -rb, rb)

        # MLP head: emb -> hid -> 10 -> 1
        mlp_w1, mlp_b1 = _linear_params(keys[4], self.hid_size, self.emb_size)
        mlp_w2, mlp_b2 = _linear_params(keys[5], 10, self.hid_size)
        mlp_w3, mlp_b3 = _linear_params(keys[6], 1, 10)
        # TODO(synk): Dropout layers in the MLP are treated as identity (eval mode).

        # per-layer aggregation linears
        l1, l2 = [], []
        for li in range(self.n_layers):
            l1.append(_linear_params(keys[7 + 2 * li],
                                     self.emb_size,
                                     self.emb_size + self.te_size + self.ef_size))
            l2.append(_linear_params(keys[8 + 2 * li],
                                     self.emb_size,
                                     self.mem_size + self.te_size + self.emb_size))

        # ---- hoist ALL kernel-side weight prep here (done once), all f32 ----
        m, e, t, emb = self.mem_size, self.ef_size, self.te_size, self.emb_size
        w_ih_t = rnn_w_ih.T            # (message_size, mem); input order [src, dst, ef, dte]
        w_hh_t = rnn_w_hh.T            # (mem, mem)
        params = {
            'te_w_row': te_w.reshape(1, t),
            'te_b_row': te_b.reshape(1, t),
            # single fused non-time weight: [src(+W_hh) | dst | ef] -> mem
            'rnn_w_x': jnp.concatenate(
                [w_ih_t[:m] + w_hh_t, w_ih_t[m:2 * m], w_ih_t[2 * m:2 * m + e]], axis=0),
            'rnn_w_dte': w_ih_t[2 * m + e:],
            'rnn_b': (rnn_b_ih + rnn_b_hh).reshape(1, m),
            'mlp_w1': mlp_w1.T,
            'mlp_b1': mlp_b1.reshape(1, -1),
            'mlp_w2': mlp_w2.T,
            'mlp_b2': mlp_b2.reshape(1, -1),
            'mlp_w3': mlp_w3.reshape(1, -1),      # VPU multiply + lane reduce
            'mlp_b3': mlp_b3.reshape(1, 1),
        }
        # constant source-time embedding: time_encode(0) = cos(bias)
        src_time_emb = jnp.cos(te_b).reshape(1, t)
        layer_params = []
        for (w1, b1), (w2, b2) in zip(l1, l2):
            w1t = w1.T                 # (emb+te+ef, emb); inputs [neigh_emb, time_emb, edge_feat]
            w2t = w2.T                 # (emb+mem+te, emb); inputs [neighbors_sum, src_feat, src_time_emb]
            layer_params.append({
                # merged weight matching the lane-concatenated [neigh_emb | edge_feat] stream
                'w1ac': jnp.concatenate([w1t[:emb], w1t[emb + t:]], axis=0),
                'w1b': w1t[emb:emb + t],
                'b1': b1.reshape(1, emb),
                'w2a': w2t[:emb],
                'w2b': w2t[emb:emb + m],
                # fold the constant src_time_emb @ w2c term into the bias
                'b2': (b2.reshape(1, emb) + src_time_emb @ w2t[emb + m:]),
            })
        params['layers'] = tuple(layer_params)
        self.params = params

        self._forward_jit = jax.jit(_forward_device)

        self.node_mem = None
        self.last_updated = None
        self.temporal_node_features = None
        self.edge_features = None
        self.neighbor_finder = None

    def init_model(self):
        # one extra sentinel row (index n_nodes) absorbs scatter writes from
        # duplicate-source / padded batch rows so every batch has static shapes.
        self.node_mem = jnp.zeros((self.n_nodes + 1, self.mem_size), F32)
        self.last_updated = jnp.zeros((self.n_nodes + 1,), F32)

    # ---------------- forward ----------------
    def forward(self, sources, destinations, timestamps, edge_idxs,
                edge_weights, edge_features, temporal_node_features, adj_list):
        n_instance = len(sources)
        n_batch = math.ceil(n_instance / self.BATCH_SIZE)
        self.temporal_node_features = jnp.asarray(temporal_node_features, F32)
        self.edge_features = jnp.asarray(edge_features, F32)
        self.neighbor_finder = SimpleNeighborFinder(
            sources, destinations, timestamps, edge_idxs, edge_weights, self.n_nodes)

        # Host: build every batch's index/neighbor tables up front (neighbor
        # lookup depends only on the static event list), stack them, then run
        # the whole stream as one jitted lax.scan + one MLP-head kernel.
        batch_data = []
        for batch_idx in range(n_batch):
            s = batch_idx * self.BATCH_SIZE
            e = min(n_instance, s + self.BATCH_SIZE)
            batch_data.append(self._prepare_batch(
                sources[s:e], destinations[s:e], timestamps[s:e], edge_idxs[s:e]))
        stacked = jax.tree_util.tree_map(
            lambda *xs: jnp.asarray(np.stack(xs, axis=0)), *batch_data)

        node_mem, last_updated, pre_class = self._forward_jit(
            self.params, self.node_mem, self.last_updated,
            self.edge_features, self.temporal_node_features, stacked)
        self.node_mem = node_mem
        self.last_updated = last_updated
        # only the last batch is padded (at its tail), so the first n_instance
        # rows of the flattened output are exactly the real events in order.
        return pre_class[:n_instance]

    # one fixed-shape batch of host-side tables (numpy, stacked later)
    def _prepare_batch(self, src, dst, ts, eidx):
        B, K = self.BATCH_SIZE, self.n_neighbors
        nb = len(src)

        def pad1(a, dtype):
            a = np.asarray(a, dtype)
            if nb < B:
                a = np.concatenate([a, np.repeat(a[-1:], B - nb, axis=0)], axis=0)
            return a

        src_p = pad1(src, np.int32)
        dst_p = pad1(dst, np.int32)
        ts_p = pad1(ts, np.float32)
        eidx_p = pad1(eidx, np.int32)

        # last-occurrence scatter index; duplicates / padded rows -> sentinel row
        scatter_idx = np.full((B,), self.n_nodes, np.int32)
        last_occurrence = {}
        for i in range(nb):
            last_occurrence[int(src_p[i])] = i
        for node, i in last_occurrence.items():
            scatter_idx[i] = node

        # host-side temporal neighbor lookups, one level per layer (k-major layout)
        levels = []
        cur_nodes = src_p.astype(np.int64)
        cur_ts = ts_p
        for _ in range(self.n_layers):
            neighbors, neidx, etimes, ew = \
                self.neighbor_finder.get_temporal_neighbor(cur_nodes, cur_ts, K)
            deltas = (cur_ts[:, None] - etimes).astype(np.float32)          # (M, K)
            levels.append(dict(
                nodes=cur_nodes.astype(np.int32),                           # (M,)
                eidx=neidx.T.reshape(-1).astype(np.int32),                  # (K*M,) k-major
                deltas=deltas.T[..., None].astype(np.float32),              # (K, M, 1)
                ew=ew.T[..., None].astype(np.float32),                      # (K, M, 1)
            ))
            cur_nodes = neighbors.T.reshape(-1)                             # (K*M,) k-major
            cur_ts = np.tile(cur_ts, K)
        return dict(src=src_p, dst=dst_p, eidx=eidx_p, ts=ts_p,
                    scatter_idx=scatter_idx,
                    leaf=cur_nodes.astype(np.int32),
                    levels=tuple(levels))


# --------------------------------------------------------------------------
# main
# --------------------------------------------------------------------------

if __name__ == "__main__":
    args = SimpleNamespace(
        n_layers=1, n_neighbors=4, batch_size=4,
        emb_size=16, hid_size=32, mem_size=16,
        time_encoding_size=8, edge_features_size=4,
        dropout=0.1, device="tpu",
    )
    n_nodes = 10
    n_instance = 8

    key = jax.random.PRNGKey(0)
    k_src, k_dst, k_ts, k_w, k_ef, k_nf = jax.random.split(key, 6)

    sources = np.asarray(jax.random.randint(k_src, (n_instance,), 1, n_nodes))
    destinations = np.asarray(jax.random.randint(k_dst, (n_instance,), 1, n_nodes))
    timestamps = np.sort(np.asarray(
        jax.random.uniform(k_ts, (n_instance,), F32, 1.0, 100.0))).astype(np.float32)
    edge_idxs = np.arange(n_instance, dtype=np.int64)
    edge_weights = np.asarray(jax.random.uniform(k_w, (n_instance,), F32, 0.1, 1.0))
    edge_features = jax.random.normal(k_ef, (n_instance, args.edge_features_size), F32)
    temporal_node_features = jax.random.normal(k_nf, (n_nodes, args.emb_size), F32)
    adj_list = None  # rebuilt internally from the event lists

    model = TGNPallas(n_nodes, args)
    model.init_model()
    out = model.forward(sources, destinations, timestamps, edge_idxs,
                        edge_weights, edge_features, temporal_node_features, adj_list)
    out = jax.block_until_ready(out)
    assert out.shape == (n_instance,)
    assert bool(jnp.all(jnp.isfinite(out)))
    print("KERNEL_OK")
</pallas_src>

<mosaic_0001>
module attributes {stable_mosaic.version = 11 : i64} {
  func.func @_memory_update_kernel(%arg0: i32, %arg1: memref<8x1xf32, #tpu.memory_space<vmem>>, %arg2: memref<8x36xf32, #tpu.memory_space<vmem>>, %arg3: memref<1x8xf32, #tpu.memory_space<vmem>>, %arg4: memref<1x8xf32, #tpu.memory_space<vmem>>, %arg5: memref<36x16xf32, #tpu.memory_space<vmem>>, %arg6: memref<8x16xf32, #tpu.memory_space<vmem>>, %arg7: memref<1x16xf32, #tpu.memory_space<vmem>>, %arg8: memref<8x16xf32, #tpu.memory_space<vmem>>) attributes {dimension_semantics = [#tpu.dimension_semantics<parallel>], iteration_bounds = array<i64: 1>, scalar_prefetch = 0 : i64, scratch_operands = 0 : i64, tpu.core_type = #tpu.core_type<tc>, window_params = [{transform_indices = @transform_0, window_bounds = array<i64: 8, 1>}, {transform_indices = @transform_1, window_bounds = array<i64: 8, 36>}, {pipeline_mode = #tpu.pipeline_mode<synchronous>, transform_indices = @transform_2, window_bounds = array<i64: 1, 8>}, {pipeline_mode = #tpu.pipeline_mode<synchronous>, transform_indices = @transform_3, window_bounds = array<i64: 1, 8>}, {pipeline_mode = #tpu.pipeline_mode<synchronous>, transform_indices = @transform_4, window_bounds = array<i64: 36, 16>}, {pipeline_mode = #tpu.pipeline_mode<synchronous>, transform_indices = @transform_5, window_bounds = array<i64: 8, 16>}, {pipeline_mode = #tpu.pipeline_mode<synchronous>, transform_indices = @transform_6, window_bounds = array<i64: 1, 16>}, {transform_indices = @transform_7, window_bounds = array<i64: 8, 16>}]} {
    %c0 = arith.constant 0 : index
    %c0_0 = arith.constant 0 : index
    %0 = vector.load %arg1[%c0, %c0_0] : memref<8x1xf32, #tpu.memory_space<vmem>>, vector<8x1xf32>
    %c0_1 = arith.constant 0 : index
    %c0_2 = arith.constant 0 : index
    %1 = vector.load %arg3[%c0_1, %c0_2] : memref<1x8xf32, #tpu.memory_space<vmem>>, vector<1x8xf32>
    %2 = vector.broadcast %0 : vector<8x1xf32> to vector<8x8xf32>
    %3 = vector.broadcast %1 : vector<1x8xf32> to vector<8x8xf32>
    %4 = arith.mulf %2, %3 : vector<8x8xf32>
    %c0_3 = arith.constant 0 : index
    %c0_4 = arith.constant 0 : index
    %5 = vector.load %arg4[%c0_3, %c0_4] : memref<1x8xf32, #tpu.memory_space<vmem>>, vector<1x8xf32>
    %6 = vector.broadcast %5 : vector<1x8xf32> to vector<8x8xf32>
    %7 = arith.addf %4, %6 : vector<8x8xf32>
    %8 = math.cos %7 : vector<8x8xf32>
    %c0_5 = arith.constant 0 : index
    %c0_6 = arith.constant 0 : index
    %9 = vector.load %arg2[%c0_5, %c0_6] : memref<8x36xf32, #tpu.memory_space<vmem>>, vector<8x36xf32>
    %c0_7 = arith.constant 0 : index
    %c0_8 = arith.constant 0 : index
    %10 = vector.load %arg5[%c0_7, %c0_8] : memref<36x16xf32, #tpu.memory_space<vmem>>, vector<36x16xf32>
    %cst = arith.constant dense<0.000000e+00> : vector<8x16xf32>
    %11 = tpu.matmul %9, %10, %cst {dimension_numbers = #tpu.dot_dimension_numbers<[1], [0], [0], [1], [0, 0, 1, 1], [], []>} : vector<8x36xf32>, vector<36x16xf32>, vector<8x16xf32> -> vector<8x16xf32>
    %c0_9 = arith.constant 0 : index
    %c0_10 = arith.constant 0 : index
    %12 = vector.load %arg6[%c0_9, %c0_10] : memref<8x16xf32, #tpu.memory_space<vmem>>, vector<8x16xf32>
    %cst_11 = arith.constant dense<0.000000e+00> : vector<8x16xf32>
    %13 = tpu.matmul %8, %12, %cst_11 {dimension_numbers = #tpu.dot_dimension_numbers<[1], [0], [0], [1], [0, 0, 1, 1], [], []>} : vector<8x8xf32>, vector<8x16xf32>, vector<8x16xf32> -> vector<8x16xf32>
    %14 = arith.addf %11, %13 : vector<8x16xf32>
    %c0_12 = arith.constant 0 : index
    %c0_13 = arith.constant 0 : index
    %15 = vector.load %arg7[%c0_12, %c0_13] : memref<1x16xf32, #tpu.memory_space<vmem>>, vector<1x16xf32>
    %16 = vector.broadcast %15 : vector<1x16xf32> to vector<8x16xf32>
    %17 = arith.addf %14, %16 : vector<8x16xf32>
    %18 = math.tanh %17 : vector<8x16xf32>
    %c0_14 = arith.constant 0 : index
    %c0_15 = arith.constant 0 : index
    %19 = vector.load %arg8[%c0_14, %c0_15] : memref<8x16xf32, #tpu.memory_space<vmem>>, vector<8x16xf32>
    tpu.vector_store %arg8[%c0_14, %c0_15], %18 {strides = array<i32>} : memref<8x16xf32, #tpu.memory_space<vmem>>, vector<8x16xf32>,
    return
  }
  func.func @transform_0(%arg0: i32) -> (i32, i32) {
    %c0_i32 = arith.constant 0 : i32
    %c0_i32_0 = arith.constant 0 : i32
    return %arg0, %c0_i32 : i32, i32
  }
  func.func @transform_1(%arg0: i32) -> (i32, i32) {
    %c0_i32 = arith.constant 0 : i32
    %c0_i32_0 = arith.constant 0 : i32
    return %arg0, %c0_i32 : i32, i32
  }
  func.func @transform_2(%arg0: i32) -> (i32, i32) {
    %c0_i32 = arith.constant 0 : i32
    %c0_i32_0 = arith.constant 0 : i32
    %c0_i32_1 = arith.constant 0 : i32
    return %c0_i32, %c0_i32_0 : i32, i32
  }
  func.func @transform_3(%arg0: i32) -> (i32, i32) {
    %c0_i32 = arith.constant 0 : i32
    %c0_i32_0 = arith.constant 0 : i32
    %c0_i32_1 = arith.constant 0 : i32
    return %c0_i32, %c0_i32_0 : i32, i32
  }
  func.func @transform_4(%arg0: i32) -> (i32, i32) {
    %c0_i32 = arith.constant 0 : i32
    %c0_i32_0 = arith.constant 0 : i32
    %c0_i32_1 = arith.constant 0 : i32
    return %c0_i32, %c0_i32_0 : i32, i32
  }
  func.func @transform_5(%arg0: i32) -> (i32, i32) {
    %c0_i32 = arith.constant 0 : i32
    %c0_i32_0 = arith.constant 0 : i32
    %c0_i32_1 = arith.constant 0 : i32
    return %c0_i32, %c0_i32_0 : i32, i32
  }
  func.func @transform_6(%arg0: i32) -> (i32, i32) {
    %c0_i32 = arith.constant 0 : i32
    %c0_i32_0 = arith.constant 0 : i32
    %c0_i32_1 = arith.constant 0 : i32
    return %c0_i32, %c0_i32_0 : i32, i32
  }
  func.func @transform_7(%arg0: i32) -> (i32, i32) {
    %c0_i32 = arith.constant 0 : i32
    %c0_i32_0 = arith.constant 0 : i32
    return %arg0, %c0_i32 : i32, i32
  }
}

module attributes {stable_mosaic.version = 11 : i64} {
  func.func @kernel(%arg0: i32, %arg1: memref<4x8x1xf32, #tpu.memory_space<vmem>>, %arg2: memref<4x8x20xf32, #tpu.memory_space<vmem>>, %arg3: memref<4x8x1xf32, #tpu.memory_space<vmem>>, %arg4: memref<8x16xf32, #tpu.memory_space<vmem>>, %arg5: memref<1x8xf32, #tpu.memory_space<vmem>>, %arg6: memref<1x8xf32, #tpu.memory_space<vmem>>, %arg7: memref<20x16xf32, #tpu.memory_space<vmem>>, %arg8: memref<8x16xf32, #tpu.memory_space<vmem>>, %arg9: memref<1x16xf32, #tpu.memory_space<vmem>>, %arg10: memref<16x16xf32, #tpu.memory_space<vmem>>, %arg11: memref<16x16xf32, #tpu.memory_space<vmem>>, %arg12: memref<1x16xf32, #tpu.memory_space<vmem>>, %arg13: memref<8x16xf32, #tpu.memory_space<vmem>>) attributes {dimension_semantics = [#tpu.dimension_semantics<parallel>], iteration_bounds = array<i64: 1>, scalar_prefetch = 0 : i64, scratch_operands = 0 : i64, tpu.core_type = #tpu.core_type<tc>, window_params = [{transform_indices = @transform_0, window_bounds = array<i64: 4, 8, 1>}, {transform_indices = @transform_1, window_bounds = array<i64: 4, 8, 20>}, {transform_indices = @transform_2, window_bounds = array<i64: 4, 8, 1>}, {transform_indices = @transform_3, window_bounds = array<i64: 8, 16>}, {pipeline_mode = #tpu.pipeline_mode<synchronous>, transform_indices = @transform_4, window_bounds = array<i64: 1, 8>}, {pipeline_mode = #tpu.pipeline_mode<synchronous>, transform_indices = @transform_5, window_bounds = array<i64: 1, 8>}, {pipeline_mode = #tpu.pipeline_mode<synchronous>, transform_indices = @transform_6, window_bounds = array<i64: 20, 16>}, {pipeline_mode = #tpu.pipeline_mode<synchronous>, transform_indices = @transform_7, window_bounds = array<i64: 8, 16>}, {pipeline_mode = #tpu.pipeline_mode<synchronous>, transform_indices = @transform_8, window_bounds = array<i64: 1, 16>}, {pipeline_mode = #tpu.pipeline_mode<synchronous>, transform_indices = @transform_9, window_bounds = array<i64: 16, 16>}, {pipeline_mode = #tpu.pipeline_mode<synchronous>, transform_indices = @transform_10, window_bounds = array<i64: 16, 16>}, {pipeline_mode = #tpu.pipeline_mode<synchronous>, transform_indices = @transform_11, window_bounds = array<i64: 1, 16>}, {transform_indices = @transform_12, window_bounds = array<i64: 8, 16>}]} {
    %c0 = arith.constant 0 : index
    %c0_0 = arith.constant 0 : index
    %0 = vector.load %arg5[%c0, %c0_0] : memref<1x8xf32, #tpu.memory_space<vmem>>, vector<1x8xf32>
    %1 = vector.shape_cast %0 : vector<1x8xf32> to vector<1x8xf32>
    %2 = vector.broadcast %1 : vector<1x8xf32> to vector<8x8xf32>
    %c0_1 = arith.constant 0 : index
    %c0_2 = arith.constant 0 : index
    %3 = vector.load %arg6[%c0_1, %c0_2] : memref<1x8xf32, #tpu.memory_space<vmem>>, vector<1x8xf32>
    %4 = vector.shape_cast %3 : vector<1x8xf32> to vector<1x8xf32>
    %5 = vector.broadcast %4 : vector<1x8xf32> to vector<8x8xf32>
    %c0_3 = arith.constant 0 : index
    %c0_4 = arith.constant 0 : index
    %c0_5 = arith.constant 0 : index
    %6 = vector.load %arg3[%c0_3, %c0_4, %c0_5] : memref<4x8x1xf32, #tpu.memory_space<vmem>>, vector<1x8x1xf32>
    %7 = vector.shape_cast %6 : vector<1x8x1xf32> to vector<8x1xf32>
    %c0_6 = arith.constant 0 : index
    %c0_7 = arith.constant 0 : index
    %c0_8 = arith.constant 0 : index
    %8 = vector.load %arg2[%c0_6, %c0_7, %c0_8] : memref<4x8x20xf32, #tpu.memory_space<vmem>>, vector<1x8x20xf32>
    %9 = vector.shape_cast %8 : vector<1x8x20xf32> to vector<8x20xf32>
    %10 = vector.broadcast %7 : vector<8x1xf32> to vector<8x20xf32>
    %11 = arith.mulf %9, %10 : vector<8x20xf32>
    %c0_9 = arith.constant 0 : index
    %c0_10 = arith.constant 0 : index
    %c0_11 = arith.constant 0 : index
    %12 = vector.load %arg1[%c0_9, %c0_10, %c0_11] : memref<4x8x1xf32, #tpu.memory_space<vmem>>, vector<1x8x1xf32>
    %13 = vector.shape_cast %12 : vector<1x8x1xf32> to vector<8x1xf32>
    %14 = vector.broadcast %13 : vector<8x1xf32> to vector<8x8xf32>
    %15 = arith.mulf %14, %2 : vector<8x8xf32>
    %16 = arith.addf %15, %5 : vector<8x8xf32>
    %17 = math.cos %16 : vector<8x8xf32>
    %18 = vector.broadcast %7 : vector<8x1xf32> to vector<8x8xf32>
    %19 = arith.mulf %17, %18 : vector<8x8xf32>
    %c1 = arith.constant 1 : index
    %c0_12 = arith.constant 0 : index
    %c0_13 = arith.constant 0 : index
    %20 = vector.load %arg3[%c1, %c0_12, %c0_13] : memref<4x8x1xf32, #tpu.memory_space<vmem>>, vector<1x8x1xf32>
    %21 = vector.shape_cast %20 : vector<1x8x1xf32> to vector<8x1xf32>
    %c1_14 = arith.constant 1 : index
    %c0_15 = arith.constant 0 : index
    %c0_16 = arith.constant 0 : index
    %22 = vector.load %arg2[%c1_14, %c0_15, %c0_16] : memref<4x8x20xf32, #tpu.memory_space<vmem>>, vector<1x8x20xf32>
    %23 = vector.shape_cast %22 : vector<1x8x20xf32> to vector<8x20xf32>
    %24 = vector.broadcast %21 : vector<8x1xf32> to vector<8x20xf32>
    %25 = arith.mulf %23, %24 : vector<8x20xf32>
    %26 = arith.addf %11, %25 : vector<8x20xf32>
    %c1_17 = arith.constant 1 : index
    %c0_18 = arith.constant 0 : index
    %c0_19 = arith.constant 0 : index
    %27 = vector.load %arg1[%c1_17, %c0_18, %c0_19] : memref<4x8x1xf32, #tpu.memory_space<vmem>>, vector<1x8x1xf32>
    %28 = vector.shape_cast %27 : vector<1x8x1xf32> to vector<8x1xf32>
    %29 = vector.broadcast %28 : vector<8x1xf32> to vector<8x8xf32>
    %30 = arith.mulf %29, %2 : vector<8x8xf32>
    %31 = arith.addf %30, %5 : vector<8x8xf32>
    %32 = math.cos %31 : vector<8x8xf32>
    %33 = vector.broadcast %21 : vector<8x1xf32> to vector<8x8xf32>
    %34 = arith.mulf %32, %33 : vector<8x8xf32>
    %35 = arith.addf %19, %34 : vector<8x8xf32>
    %36 = arith.addf %7, %21 : vector<8x1xf32>
    %c2 = arith.constant 2 : index
    %c0_20 = arith.constant 0 : index
    %c0_21 = arith.constant 0 : index
    %37 = vector.load %arg3[%c2, %c0_20, %c0_21] : memref<4x8x1xf32, #tpu.memory_space<vmem>>, vector<1x8x1xf32>
    %38 = vector.shape_cast %37 : vector<1x8x1xf32> to vector<8x1xf32>
    %c2_22 = arith.constant 2 : index
    %c0_23 = arith.constant 0 : index
    %c0_24 = arith.constant 0 : index
    %39 = vector.load %arg2[%c2_22, %c0_23, %c0_24] : memref<4x8x20xf32, #tpu.memory_space<vmem>>, vector<1x8x20xf32>
    %40 = vector.shape_cast %39 : vector<1x8x20xf32> to vector<8x20xf32>
    %41 = vector.broadcast %38 : vector<8x1xf32> to vector<8x20xf32>
    %42 = arith.mulf %40, %41 : vector<8x20xf32>
    %43 = arith.addf %26, %42 : vector<8x20xf32>
    %c2_25 = arith.constant 2 : index
    %c0_26 = arith.constant 0 : index
    %c0_27 = arith.constant 0 : index
    %44 = vector.load %arg1[%c2_25, %c0_26, %c0_27] : memref<4x8x1xf32, #tpu.memory_space<vmem>>, vector<1x8x1xf32>
    %45 = vector.shape_cast %44 : vector<1x8x1xf32> to vector<8x1xf32>
    %46 = vector.broadcast %45 : vector<8x1xf32> to vector<8x8xf32>
    %47 = arith.mulf %46, %2 : vector<8x8xf32>
    %48 = arith.addf %47, %5 : vector<8x8xf32>
    %49 = math.cos %48 : vector<8x8xf32>
    %50 = vector.broadcast %38 : vector<8x1xf32> to vector<8x8xf32>
    %51 = arith.mulf %49, %50 : vector<8x8xf32>
    %52 = arith.addf %35, %51 : vector<8x8xf32>
    %53 = arith.addf %36, %38 : vector<8x1xf32>
    %c3 = arith.constant 3 : index
    %c0_28 = arith.constant 0 : index
    %c0_29 = arith.constant 0 : index
    %54 = vector.load %arg3[%c3, %c0_28, %c0_29] : memref<4x8x1xf32, #tpu.memory_space<vmem>>, vector<1x8x1xf32>
    %55 = vector.shape_cast %54 : vector<1x8x1xf32> to vector<8x1xf32>
    %c3_30 = arith.constant 3 : index
    %c0_31 = arith.constant 0 : index
    %c0_32 = arith.constant 0 : index
    %56 = vector.load %arg2[%c3_30, %c0_31, %c0_32] : memref<4x8x20xf32, #tpu.memory_space<vmem>>, vector<1x8x20xf32>
    %57 = vector.shape_cast %56 : vector<1x8x20xf32> to vector<8x20xf32>
    %58 = vector.broadcast %55 : vector<8x1xf32> to vector<8x20xf32>
    %59 = arith.mulf %57, %58 : vector<8x20xf32>
    %60 = arith.addf %43, %59 : vector<8x20xf32>
    %c3_33 = arith.constant 3 : index
    %c0_34 = arith.constant 0 : index
    %c0_35 = arith.constant 0 : index
    %61 = vector.load %arg1[%c3_33, %c0_34, %c0_35] : memref<4x8x1xf32, #tpu.memory_space<vmem>>, vector<1x8x1xf32>
    %62 = vector.shape_cast %61 : vector<1x8x1xf32> to vector<8x1xf32>
    %63 = vector.broadcast %62 : vector<8x1xf32> to vector<8x8xf32>
    %64 = arith.mulf %63, %2 : vector<8x8xf32>
    %65 = arith.addf %64, %5 : vector<8x8xf32>
    %66 = math.cos %65 : vector<8x8xf32>
    %67 = vector.broadcast %55 : vector<8x1xf32> to vector<8x8xf32>
    %68 = arith.mulf %66, %67 : vector<8x8xf32>
    %69 = arith.addf %52, %68 : vector<8x8xf32>
    %70 = arith.addf %53, %55 : vector<8x1xf32>
    %c0_36 = arith.constant 0 : index
    %c0_37 = arith.constant 0 : index
    %71 = vector.load %arg7[%c0_36, %c0_37] : memref<20x16xf32, #tpu.memory_space<vmem>>, vector<20x16xf32>
    %cst = arith.constant dense<0.000000e+00> : vector<8x16xf32>
    %72 = tpu.matmul %60, %71, %cst {dimension_numbers = #tpu.dot_dimension_numbers<[1], [0], [0], [1], [0, 0, 1, 1], [], []>} : vector<8x20xf32>, vector<20x16xf32>, vector<8x16xf32> -> vector<8x16xf32>
    %c0_38 = arith.constant 0 : index
    %c0_39 = arith.constant 0 : index
    %73 = vector.load %arg8[%c0_38, %c0_39] : memref<8x16xf32, #tpu.memory_space<vmem>>, vector<8x16xf32>
    %cst_40 = arith.constant dense<0.000000e+00> : vector<8x16xf32>
    %74 = tpu.matmul %69, %73, %cst_40 {dimension_numbers = #tpu.dot_dimension_numbers<[1], [0], [0], [1], [0, 0, 1, 1], [], []>} : vector<8x8xf32>, vector<8x16xf32>, vector<8x16xf32> -> vector<8x16xf32>
    %75 = arith.addf %72, %74 : vector<8x16xf32>
    %c0_41 = arith.constant 0 : index
    %c0_42 = arith.constant 0 : index
    %76 = vector.load %arg9[%c0_41, %c0_42] : memref<1x16xf32, #tpu.memory_space<vmem>>, vector<1x16xf32>
    %77 = vector.broadcast %70 : vector<8x1xf32> to vector<8x16xf32>
    %78 = vector.broadcast %76 : vector<1x16xf32> to vector<8x16xf32>
    %79 = arith.mulf %77, %78 : vector<8x16xf32>
    %80 = arith.addf %75, %79 : vector<8x16xf32>
    %cst_43 = arith.constant 0.000000e+00 : f32
    %81 = vector.broadcast %cst_43 : f32 to vector<8x16xf32>
    %82 = arith.maximumf %80, %81 : vector<8x16xf32>
    %c0_44 = arith.constant 0 : index
    %c0_45 = arith.constant 0 : index
    %83 = vector.load %arg10[%c0_44, %c0_45] : memref<16x16xf32, #tpu.memory_space<vmem>>, vector<16x16xf32>
    %cst_46 = arith.constant dense<0.000000e+00> : vector<8x16xf32>
    %84 = tpu.matmul %82, %83, %cst_46 {dimension_numbers = #tpu.dot_dimension_numbers<[1], [0], [0], [1], [0, 0, 1, 1], [], []>} : vector<8x16xf32>, vector<16x16xf32>, vector<8x16xf32> -> vector<8x16xf32>
    %c0_47 = arith.constant 0 : index
    %c0_48 = arith.constant 0 : index
    %85 = vector.load %arg4[%c0_47, %c0_48] : memref<8x16xf32, #tpu.memory_space<vmem>>, vector<8x16xf32>
    %c0_49 = arith.constant 0 : index
    %c0_50 = arith.constant 0 : index
    %86 = vector.load %arg11[%c0_49, %c0_50] : memref<16x16xf32, #tpu.memory_space<vmem>>, vector<16x16xf32>
    %cst_51 = arith.constant dense<0.000000e+00> : vector<8x16xf32>
    %87 = tpu.matmul %85, %86, %cst_51 {dimension_numbers = #tpu.dot_dimension_numbers<[1], [0], [0], [1], [0, 0, 1, 1], [], []>} : vector<8x16xf32>, vector<16x16xf32>, vector<8x16xf32> -> vector<8x16xf32>
    %88 = arith.addf %84, %87 : vector<8x16xf32>
    %c0_52 = arith.constant 0 : index
    %c0_53 = arith.constant 0 : index
    %89 = vector.load %arg12[%c0_52, %c0_53] : memref<1x16xf32, #tpu.memory_space<vmem>>, vector<1x16xf32>
    %90 = vector.broadcast %89 : vector<1x16xf32> to vector<8x16xf32>
    %91 = arith.addf %88, %90 : vector<8x16xf32>
    %c0_54 = arith.constant 0 : index
    %c0_55 = arith.constant 0 : index
    %92 = vector.load %arg13[%c0_54, %c0_55] : memref<8x16xf32, #tpu.memory_space<vmem>>, vector<8x16xf32>
    tpu.vector_store %arg13[%c0_54, %c0_55], %91 {strides = array<i32>} : memref<8x16xf32, #tpu.memory_space<vmem>>, vector<8x16xf32>,
    return
  }
  func.func @transform_0(%arg0: i32) -> (i32, i32, i32) {
    %c0_i32 = arith.constant 0 : i32
    %c0_i32_0 = arith.constant 0 : i32
    %c0_i32_1 = arith.constant 0 : i32
    return %c0_i32, %arg0, %c0_i32_0 : i32, i32, i32
  }
  func.func @transform_1(%arg0: i32) -> (i32, i32, i32) {
    %c0_i32 = arith.constant 0 : i32
    %c0_i32_0 = arith.constant 0 : i32
    %c0_i32_1 = arith.constant 0 : i32
    return %c0_i32, %arg0, %c0_i32_0 : i32, i32, i32
  }
  func.func @transform_2(%arg0: i32) -> (i32, i32, i32) {
    %c0_i32 = arith.constant 0 : i32
    %c0_i32_0 = arith.constant 0 : i32
    %c0_i32_1 = arith.constant 0 : i32
    return %c0_i32, %arg0, %c0_i32_0 : i32, i32, i32
  }
  func.func @transform_3(%arg0: i32) -> (i32, i32) {
    %c0_i32 = arith.constant 0 : i32
    %c0_i32_0 = arith.constant 0 : i32
    return %arg0, %c0_i32 : i32, i32
  }
  func.func @transform_4(%arg0: i32) -> (i32, i32) {
    %c0_i32 = arith.constant 0 : i32
    %c0_i32_0 = arith.constant 0 : i32
    %c0_i32_1 = arith.constant 0 : i32
    return %c0_i32, %c0_i32_0 : i32, i32
  }
  func.func @transform_5(%arg0: i32) -> (i32, i32) {
    %c0_i32 = arith.constant 0 : i32
    %c0_i32_0 = arith.constant 0 : i32
    %c0_i32_1 = arith.constant 0 : i32
    return %c0_i32, %c0_i32_0 : i32, i32
  }
  func.func @transform_6(%arg0: i32) -> (i32, i32) {
    %c0_i32 = arith.constant 0 : i32
    %c0_i32_0 = arith.constant 0 : i32
    %c0_i32_1 = arith.constant 0 : i32
    return %c0_i32, %c0_i32_0 : i32, i32
  }
  func.func @transform_7(%arg0: i32) -> (i32, i32) {
    %c0_i32 = arith.constant 0 : i32
    %c0_i32_0 = arith.constant 0 : i32
    %c0_i32_1 = arith.constant 0 : i32
    return %c0_i32, %c0_i32_0 : i32, i32
  }
  func.func @transform_8(%arg0: i32) -> (i32, i32) {
    %c0_i32 = arith.constant 0 : i32
    %c0_i32_0 = arith.constant 0 : i32
    %c0_i32_1 = arith.constant 0 : i32
    return %c0_i32, %c0_i32_0 : i32, i32
  }
  func.func @transform_9(%arg0: i32) -> (i32, i32) {
    %c0_i32 = arith.constant 0 : i32
    %c0_i32_0 = arith.constant 0 : i32
    %c0_i32_1 = arith.constant 0 : i32
    return %c0_i32, %c0_i32_0 : i32, i32
  }
  func.func @transform_10(%arg0: i32) -> (i32, i32) {
    %c0_i32 = arith.constant 0 : i32
    %c0_i32_0 = arith.constant 0 : i32
    %c0_i32_1 = arith.constant 0 : i32
    return %c0_i32, %c0_i32_0 : i32, i32
  }
  func.func @transform_11(%arg0: i32) -> (i32, i32) {
    %c0_i32 = arith.constant 0 : i32
    %c0_i32_0 = arith.constant 0 : i32
    %c0_i32_1 = arith.constant 0 : i32
    return %c0_i32, %c0_i32_0 : i32, i32
  }
  func.func @transform_12(%arg0: i32) -> (i32, i32) {
    %c0_i32 = arith.constant 0 : i32
    %c0_i32_0 = arith.constant 0 : i32
    return %arg0, %c0_i32 : i32, i32
  }
}

module attributes {stable_mosaic.version = 11 : i64} {
  func.func @_mlp_kernel(%arg0: i32, %arg1: memref<8x16xf32, #tpu.memory_space<vmem>>, %arg2: memref<16x32xf32, #tpu.memory_space<vmem>>, %arg3: memref<1x32xf32, #tpu.memory_space<vmem>>, %arg4: memref<32x10xf32, #tpu.memory_space<vmem>>, %arg5: memref<1x10xf32, #tpu.memory_space<vmem>>, %arg6: memref<1x10xf32, #tpu.memory_space<vmem>>, %arg7: memref<1x1xf32, #tpu.memory_space<vmem>>, %arg8: memref<8x1xf32, #tpu.memory_space<vmem>>) attributes {dimension_semantics = [#tpu.dimension_semantics<parallel>], iteration_bounds = array<i64: 1>, scalar_prefetch = 0 : i64, scratch_operands = 0 : i64, tpu.core_type = #tpu.core_type<tc>, window_params = [{transform_indices = @transform_0, window_bounds = array<i64: 8, 16>}, {pipeline_mode = #tpu.pipeline_mode<synchronous>, transform_indices = @transform_1, window_bounds = array<i64: 16, 32>}, {pipeline_mode = #tpu.pipeline_mode<synchronous>, transform_indices = @transform_2, window_bounds = array<i64: 1, 32>}, {pipeline_mode = #tpu.pipeline_mode<synchronous>, transform_indices = @transform_3, window_bounds = array<i64: 32, 10>}, {pipeline_mode = #tpu.pipeline_mode<synchronous>, transform_indices = @transform_4, window_bounds = array<i64: 1, 10>}, {pipeline_mode = #tpu.pipeline_mode<synchronous>, transform_indices = @transform_5, window_bounds = array<i64: 1, 10>}, {pipeline_mode = #tpu.pipeline_mode<synchronous>, transform_indices = @transform_6, window_bounds = array<i64: 1, 1>}, {transform_indices = @transform_7, window_bounds = array<i64: 8, 1>}]} {
    %c0 = arith.constant 0 : index
    %c0_0 = arith.constant 0 : index
    %0 = vector.load %arg1[%c0, %c0_0] : memref<8x16xf32, #tpu.memory_space<vmem>>, vector<8x16xf32>
    %c0_1 = arith.constant 0 : index
    %c0_2 = arith.constant 0 : index
    %1 = vector.load %arg2[%c0_1, %c0_2] : memref<16x32xf32, #tpu.memory_space<vmem>>, vector<16x32xf32>
    %cst = arith.constant dense<0.000000e+00> : vector<8x32xf32>
    %2 = tpu.matmul %0, %1, %cst {dimension_numbers = #tpu.dot_dimension_numbers<[1], [0], [0], [1], [0, 0, 1, 1], [], []>} : vector<8x16xf32>, vector<16x32xf32>, vector<8x32xf32> -> vector<8x32xf32>
    %c0_3 = arith.constant 0 : index
    %c0_4 = arith.constant 0 : index
    %3 = vector.load %arg3[%c0_3, %c0_4] : memref<1x32xf32, #tpu.memory_space<vmem>>, vector<1x32xf32>
    %4 = vector.broadcast %3 : vector<1x32xf32> to vector<8x32xf32>
    %5 = arith.addf %2, %4 : vector<8x32xf32>
    %cst_5 = arith.constant 0.000000e+00 : f32
    %6 = vector.broadcast %cst_5 : f32 to vector<8x32xf32>
    %7 = arith.maximumf %5, %6 : vector<8x32xf32>
    %c0_6 = arith.constant 0 : index
    %c0_7 = arith.constant 0 : index
    %8 = vector.load %arg4[%c0_6, %c0_7] : memref<32x10xf32, #tpu.memory_space<vmem>>, vector<32x10xf32>
    %cst_8 = arith.constant dense<0.000000e+00> : vector<8x10xf32>
    %9 = tpu.matmul %7, %8, %cst_8 {dimension_numbers = #tpu.dot_dimension_numbers<[1], [0], [0], [1], [0, 0, 1, 1], [], []>} : vector<8x32xf32>, vector<32x10xf32>, vector<8x10xf32> -> vector<8x10xf32>
    %c0_9 = arith.constant 0 : index
    %c0_10 = arith.constant 0 : index
    %10 = vector.load %arg5[%c0_9, %c0_10] : memref<1x10xf32, #tpu.memory_space<vmem>>, vector<1x10xf32>
    %11 = vector.broadcast %10 : vector<1x10xf32> to vector<8x10xf32>
    %12 = arith.addf %9, %11 : vector<8x10xf32>
    %cst_11 = arith.constant 0.000000e+00 : f32
    %13 = vector.broadcast %cst_11 : f32 to vector<8x10xf32>
    %14 = arith.maximumf %12, %13 : vector<8x10xf32>
    %c0_12 = arith.constant 0 : index
    %c0_13 = arith.constant 0 : index
    %15 = vector.load %arg6[%c0_12, %c0_13] : memref<1x10xf32, #tpu.memory_space<vmem>>, vector<1x10xf32>
    %16 = vector.broadcast %15 : vector<1x10xf32> to vector<8x10xf32>
    %17 = arith.mulf %14, %16 : vector<8x10xf32>
    %cst_14 = arith.constant dense<0.000000e+00> : vector<8xf32>
    %18 = vector.multi_reduction <add>, %17, %cst_14 [1] : vector<8x10xf32> to vector<8xf32>
    %19 = vector.shape_cast %18 : vector<8xf32> to vector<8x1xf32>
    %c0_15 = arith.constant 0 : index
    %c0_16 = arith.constant 0 : index
    %20 = vector.load %arg7[%c0_15, %c0_16] : memref<1x1xf32, #tpu.memory_space<vmem>>, vector<1x1xf32>
    %21 = vector.broadcast %20 : vector<1x1xf32> to vector<8x1xf32>
    %22 = arith.addf %19, %21 : vector<8x1xf32>
    %cst_17 = arith.constant 5.000000e-01 : f32
    %23 = vector.broadcast %cst_17 : f32 to vector<8x1xf32>
    %24 = arith.mulf %23, %22 : vector<8x1xf32>
    %25 = math.tanh %24 : vector<8x1xf32>
    %cst_18 = arith.constant 1.000000e+00 : f32
    %26 = vector.broadcast %cst_18 : f32 to vector<8x1xf32>
    %27 = arith.addf %25, %26 : vector<8x1xf32>
    %cst_19 = arith.constant 5.000000e-01 : f32
    %28 = vector.broadcast %cst_19 : f32 to vector<8x1xf32>
    %29 = arith.mulf %28, %27 : vector<8x1xf32>
    %c0_20 = arith.constant 0 : index
    %c0_21 = arith.constant 0 : index
    %30 = vector.load %arg8[%c0_20, %c0_21] : memref<8x1xf32, #tpu.memory_space<vmem>>, vector<8x1xf32>
    tpu.vector_store %arg8[%c0_20, %c0_21], %29 {strides = array<i32>} : memref<8x1xf32, #tpu.memory_space<vmem>>, vector<8x1xf32>,
    return
  }
  func.func @transform_0(%arg0: i32) -> (i32, i32) {
    %c0_i32 = arith.constant 0 : i32
    %c0_i32_0 = arith.constant 0 : i32
    return %arg0, %c0_i32 : i32, i32
  }
  func.func @transform_1(%arg0: i32) -> (i32, i32) {
    %c0_i32 = arith.constant 0 : i32
    %c0_i32_0 = arith.constant 0 : i32
    %c0_i32_1 = arith.constant 0 : i32
    return %c0_i32, %c0_i32_0 : i32, i32
  }
  func.func @transform_2(%arg0: i32) -> (i32, i32) {
    %c0_i32 = arith.constant 0 : i32
    %c0_i32_0 = arith.constant 0 : i32
    %c0_i32_1 = arith.constant 0 : i32
    return %c0_i32, %c0_i32_0 : i32, i32
  }
  func.func @transform_3(%arg0: i32) -> (i32, i32) {
    %c0_i32 = arith.constant 0 : i32
    %c0_i32_0 = arith.constant 0 : i32
    %c0_i32_1 = arith.constant 0 : i32
    return %c0_i32, %c0_i32_0 : i32, i32
  }
  func.func @transform_4(%arg0: i32) -> (i32, i32) {
    %c0_i32 = arith.constant 0 : i32
    %c0_i32_0 = arith.constant 0 : i32
    %c0_i32_1 = arith.constant 0 : i32
    return %c0_i32, %c0_i32_0 : i32, i32
  }
  func.func @transform_5(%arg0: i32) -> (i32, i32) {
    %c0_i32 = arith.constant 0 : i32
    %c0_i32_0 = arith.constant 0 : i32
    %c0_i32_1 = arith.constant 0 : i32
    return %c0_i32, %c0_i32_0 : i32, i32
  }
  func.func @transform_6(%arg0: i32) -> (i32, i32) {
    %c0_i32 = arith.constant 0 : i32
    %c0_i32_0 = arith.constant 0 : i32
    %c0_i32_1 = arith.constant 0 : i32
    return %c0_i32, %c0_i32_0 : i32, i32
  }
  func.func @transform_7(%arg0: i32) -> (i32, i32) {
    %c0_i32 = arith.constant 0 : i32
    %c0_i32_0 = arith.constant 0 : i32
    return %arg0, %c0_i32 : i32, i32
  }
}

</mosaic_0001>

<llo_original>
// kernel: custom-call.18
$region0: #{custom-call.18}
  %s0 = inlined_call_operand.vmem [shape: f32[2,4,16], index: 0, kind: output, shape index: {}]

// kernel: sub.13
$region0: #{sub.13}
  #allocation0 [shape = 's32[1]{0}', space=sflag, size = 0x4, scoped, tag = 'scoped memory for sub.13']
  %s0 = inlined_call_operand.vmem [shape: f32[4,1], index: 0, kind: input, shape index: {}]
  %s1 = inlined_call_operand.vmem [shape: f32[4,1], index: 1, kind: input, shape index: {}]
  %s2 = inlined_call_operand.vmem [shape: f32[4,1], index: 2, kind: output, shape index: {}]
  %v3 = vld [vmem:[%s0] sm:$0xf]
  %v4 = vld [vmem:[%s1] sm:$0xf]
  %5 = xla_tuple %v3, %v4
  %6 = xla_tuple %5
  %v7 = vsub.f32 %v3, %v4
  %8 = xla_tuple %v7
  %9 = vst [vmem:[%s2] sm:$0xf] %v7

// kernel: closed_call.16
$region0: #{closed_call.16}
  #allocation0 [shape = 'u32[]', space=smem, size = 0x4, offset = 0x4, fixed_abs, tag = 'smem constant byte address 0x4 - core index']
  #allocation1 [shape = 'u32[144,128]{1,0:T(1,128)}', space=vmem, size = 0x12000, scoped, tag = 'internal scratch']
  %s0 = inlined_call_operand.vmem [shape: f32[8,1], index: 0, kind: input, shape index: {}]
  %s1 = inlined_call_operand.vmem [shape: f32[8,36], index: 1, kind: input, shape index: {}]
  %s2 = inlined_call_operand.vmem [shape: f32[1,8], index: 2, kind: input, shape index: {}]
  %s3 = inlined_call_operand.vmem [shape: f32[1,8], index: 3, kind: input, shape index: {}]
  %s4 = inlined_call_operand.vmem [shape: f32[36,16], index: 4, kind: input, shape index: {}]
  %s5 = inlined_call_operand.vmem [shape: f32[8,16], index: 5, kind: input, shape index: {}]
  %s6 = inlined_call_operand.vmem [shape: f32[1,16], index: 6, kind: input, shape index: {}]
  %s7 = inlined_call_operand.vmem [shape: f32[8,16], index: 7, kind: output, shape index: {}]
  %s8 = sld [smem:[#allocation0]]
  $region38: #{closed_call.16} parent=0
    _
  %s10 = ssub.s32 1, %s8
  %s11 = scalar_select 0, %s10, %s8
  // Predicated region
  $region2: #{closed_call.16} parent=0 // pred_check
    _
  $region3: #{closed_call.16} parent=0 // pred_check_branch
    %13 = sbr.rel (0) target = $region5
  $region4: #{closed_call.16} parent=0 // pred_region
    _
  $region5: #{closed_call.16} parent=0 // pred_fallthru
    _
  // Predicated region
  $region6: #{closed_call.16} parent=0 // pred_check
    _
  $region7: #{closed_call.16} parent=0 // pred_check_branch
    %15 = sbr.rel (0) target = $region9
  $region8: #{closed_call.16} parent=0 // pred_region
    _
  $region9: #{closed_call.16} parent=0 // pred_fallthru
    _
  // Predicated region
  $region10: #{closed_call.16} parent=0 // pred_check
    _
  $region11: #{closed_call.16} parent=0 // pred_check_branch
    %17 = sbr.rel (0) target = $region13
  $region12: #{closed_call.16} parent=0 // pred_region
    _
  $region13: #{closed_call.16} parent=0 // pred_fallthru
    _
  // Predicated region
  $region14: #{closed_call.16} parent=0 // pred_check
    _
  $region15: #{closed_call.16} parent=0 // pred_check_branch
    %19 = sbr.rel (0) target = $region17
  $region16: #{closed_call.16} parent=0 // pred_region
    _
  $region17: #{closed_call.16} parent=0 // pred_fallthru
    _
  // Predicated region
  $region18: #{closed_call.16} parent=0 // pred_check
    _
  $region19: #{closed_call.16} parent=0 // pred_check_branch
    %21 = sbr.rel (0) target = $region21
  $region20: #{closed_call.16} parent=0 // pred_region
    _
  $region21: #{closed_call.16} parent=0 // pred_fallthru
    _
  // Predicated region
  $region22: #{closed_call.16} parent=0 // pred_check
    _
  $region23: #{closed_call.16} parent=0 // pred_check_branch
    %23 = sbr.rel (0) target = $region25
  $region24: #{closed_call.16} parent=0 // pred_region
    _
  $region25: #{closed_call.16} parent=0 // pred_fallthru
    _
  // Predicated region
  $region26: #{closed_call.16} parent=0 // pred_check
    _
  $region27: #{closed_call.16} parent=0 // pred_check_branch
    %25 = sbr.rel (0) target = $region29
  $region28: #{closed_call.16} parent=0 // pred_region
    _
  $region29: #{closed_call.16} parent=0 // pred_fallthru
    _
  %v26 = vld [vmem:[%s0] sm:$0xff]
  %v27 = vld [vmem:[%s2] sm:$0x1]
  %29 = vset.pattern.permute.xlu0 0
  %30 = vperm.xlu0 %29, %v26
  %v31 = vpop.permute.xlu0 %30
  %v34 = vlaneseq
  %v35 = vshrl.u32 %v34, 7
  %v36 = vsub.s32 0, %v35
  %v37 = vrot.slane %v27, %v36
  %v39 = vmul.f32 %v31, %v37
  %v40 = vld [vmem:[%s3] sm:$0x1]
  %v42 = vlaneseq
  %v43 = vshrl.u32 %v42, 7
  %v44 = vsub.s32 0, %v43
  %v45 = vrot.slane %v40, %v44
  %v47 = vadd.f32 %v39, %v45
  %v48 = vand.u32 2147483647, %v47
  %vm49 = vcmp.le.f32.partialorder %v48, 0.7853982
  %vm50 = vcmp.lt.s32.totalorder %v47, 0
  %v51 = vand.u32 %v47, 2139095040
  %v52 = vshrl.u32 %v51, 23
  %v53 = vsub.s32 %v52, 127
  %v54 = vand.u32 2147483647, %v47
  %v55 = vand.u32 %v54, 8388607
  %v56 = vor.u32 %v55, 8388608
  %v57 = vsub.s32 0, %v56
  %v58 = vadd.s32 %v53, 1
  %vm59 = vcmp.gt.s32.totalorder %v58, 0
  %v60 = vsel %vm59, %v58, 0
  %v61 = vshrl.u32 %v60, 5
  %v62 = vand.u32 %v60, 31
  %v63 = vsub.s32 32, %v62
  %v64 = vshrl.u32 683565275, %v63
  %v65 = vshll.u32 683565275, %v62
  %v66 = vshrl.u32 2475754826, %v63
  %v67 = vor.u32 %v65, %v66
  %v68 = vshll.u32 2475754826, %v62
  %v69 = vshrl.u32 2131351028, %v63
  %v70 = vor.u32 %v68, %v69
  %v71 = vshll.u32 2131351028, %v62
  %v72 = vshrl.u32 2102212464, %v63
  %v73 = vor.u32 %v71, %v72
  %v74 = vshll.u32 2102212464, %v62
  %v75 = vshrl.u32 920167782, %v63
  %v76 = vor.u32 %v74, %v75
  %v77 = vshll.u32 920167782, %v62
  %v78 = vshrl.u32 1326507024, %v63
  %v79 = vor.u32 %v77, %v78
  %vm80 = vcmp.lt.s32.totalorder %v61, 1
  %vm81 = vcmp.lt.s32.totalorder %v61, 2
  %vm82 = vcmp.lt.s32.totalorder %v61, 3
  %vm83 = vcmp.lt.s32.totalorder %v61, 4
  %v84 = vsel %vm80, %v64, %v67
  %v85 = vsel %vm83, %v73, 2102212464
  %v86 = vsel %vm82, %v70, %v85
  %v87 = vsel %vm81, %v84, %v86
  %v88 = vsel %vm80, %v67, %v70
  %v89 = vsel %vm83, %v76, 920167782
  %v90 = vsel %vm82, %v73, %v89
  %v91 = vsel %vm81, %v88, %v90
  %v92 = vsel %vm80, %v70, %v73
  %v93 = vsel %vm83, %v79, 1326507024
  %v94 = vsel %vm82, %v76, %v93
  %v95 = vsel %vm81, %v92, %v94
  %v96 = vshll.u32 %v56, 8
  %v97 = vmul.u32.u64.compose %v96, %v95
  %v98 = vextract.low.u32 %v97
  %v99 = vextract.high.u32 %v97
  %v100 = vmul.u32.u64.compose %v96, %v91
  %v101 = vextract.low.u32 %v100
  %v102 = vextract.high.u32 %v100
  %v103 = vmul.u32 %v96, %v87
  %v104 = vadd.s32 %v99, %v101
  %vm105 = vc.u32 %v99, %v101
  %v106 = vadd.s32 %v102, 1
  %v107 = vsel %vm105, %v106, %v102
  %v108 = vadd.s32 %v103, %v107
  %v109 = vadd.s32 %v108, 536870912
  %v110 = vshrl.u32 %v109, 30
  %v111 = vshll.u32 %v110, 30
  %v112 = vsub.s32 %v108, %v111
  %vm113 = vcmp.lt.s32.totalorder %v112, 0
  %v114 = vsub.s32 0, %v112
  %v115 = vsel %vm113, %v114, %v112
  %v116 = vclz %v115
  %v117 = vsub.s32 %v116, 2
  %vm118 = vcmp.gt.s32.totalorder 0, %v117
  %v119 = vsel %vm118, 0, %v117
  %v120 = vsub.s32 32, %v119
  %v121 = vshll.u32 %v112, %v119
  %v122 = vshrl.u32 %v104, %v120
  %v123 = vor.u32 %v121, %v122
  %v124 = vsub.s32 4294967266, %v119
  %v125 = vadd.s32 %v124, 127
  %v126 = vshll.u32 %v125, 23
  %v127 = vor.u32 4788187, %v126
  %v128 = vand.u32 2147483647, %v127
  %v130 = vcvt.s32.f32 %v123
  %v131 = vmul.f32 %v130, %v128
  %v132 = vxor.u32 %v131, 2147483648
  %v133 = vsel %vm50, %v132, %v131
  %v134 = vsub.s32 4, %v110
  %v135 = vsel %vm50, %v134, %v110
  %v136 = vsel %vm49, %v47, %v133
  %v137 = vsel %vm49, 0, %v135
  %v138 = vcosq.f32.pop %v136
  %v139 = vsinq.f32.pop %v136
  %vm140 = vweird.f32 %v47
  %v141 = vand.u32 %v137, 3
  %vm142 = vcmp.lt.s32.totalorder %v141, 2
  %vm143 = vcmp.eq.s32.totalorder %v141, 0
  %v144 = vxor.u32 %v139, 2147483648
  %v145 = vsel %vm143, %v138, %v144
  %vm146 = vcmp.eq.s32.totalorder %v141, 2
  %v147 = vxor.u32 %v138, 2147483648
  %v148 = vsel %vm146, %v147, %v139
  %v149 = vsel %vm142, %v145, %v148
  %v150 = vsel %vm140, nan, %v149
  %v151 = vld [vmem:[%s1] sm:$0xff]
  %v152 = vld [vmem:[%s4] sm:$0xff]
  %v153 = vld [vmem:[%s4 + $0x8] sm:$0xff]
  %v154 = vld [vmem:[%s4 + $0x10] sm:$0xff]
  %v155 = vld [vmem:[%s4 + $0x18] sm:$0xff]
  %v156 = vld [vmem:[%s4 + $0x20] sm:$0xf]
  %v157 = vld [vmem:[%s5] sm:$0xff]
  %vm158 = vcmask 64512
  %v160 = vsel %vm158, %v150, 0
  %162 = vmatprep.subr.mxu0 0.0
  %163 = vmatpush1.msra.mxu0 0.0
  %164 = vmatprep.subr.mxu0 0.0
  %165 = vmatpush1.msra.mxu0 0.0
  %166 = vmatprep.subr.mxu0 0.0
  %167 = vmatpush1.msra.mxu0 0.0
  %168 = vmatprep.subr.mxu0 0.0
  %169 = vmatpush1.msra.mxu0 0.0
  %170 = vmatprep.subr.mxu0 0.0
  %171 = vmatpush1.msra.mxu0 0.0
  %172 = vmatprep.subr.mxu0 0.0
  %173 = vmatpush1.msra.mxu0 0.0
  %174 = vmatprep.subr.mxu0 0.0
  %175 = vmatpush1.msra.mxu0 0.0
  %176 = vmatprep.subr.mxu0 0.0
  %177 = vmatpush1.msra.mxu0 0.0
  %178 = vmatprep.subr.mxu0 0.0
  %179 = vmatpush1.msra.mxu0 0.0
  %180 = vmatprep.subr.mxu0 0.0
  %181 = vmatpush1.msra.mxu0 0.0
  %182 = vmatprep.subr.mxu0 0.0
  %183 = vmatpush1.msra.mxu0 0.0
  %184 = vmatprep.subr.mxu0 0.0
  %185 = vmatpush1.msra.mxu0 0.0
  %186 = vmatprep.subr.mxu0 0.0
  %187 = vmatpush1.msra.mxu0 0.0
  %188 = vmatprep.subr.mxu0 0.0
  %189 = vmatpush1.msra.mxu0 0.0
  %190 = vmatprep.subr.mxu0 0.0
  %191 = vmatpush1.msra.mxu0 0.0
  %192 = vmatprep.subr.mxu0 0.0
  %193 = vmatpush1.msra.mxu0 %v157
  %194 = vmatprep.subr.mxu0 0.0
  %195 = vmatpush2.msra.mxu0 0.0
  %196 = vmatprep.subr.mxu0 0.0
  %197 = vmatpush2.msra.mxu0 0.0
  %198 = vmatprep.subr.mxu0 0.0
  %199 = vmatpush2.msra.mxu0 0.0
  %200 = vmatprep.subr.mxu0 0.0
  %201 = vmatpush2.msra.mxu0 0.0
  %202 = vmatprep.subr.mxu0 0.0
  %203 = vmatpush2.msra.mxu0 0.0
  %204 = vmatprep.subr.mxu0 0.0
  %205 = vmatpush2.msra.mxu0 0.0
  %206 = vmatprep.subr.mxu0 0.0
  %207 = vmatpush2.msra.mxu0 0.0
  %208 = vmatprep.subr.mxu0 0.0
  %209 = vmatpush2.msra.mxu0 0.0
  %210 = vmatprep.subr.mxu0 0.0
  %211 = vmatpush2.msra.mxu0 0.0
  %212 = vmatprep.subr.mxu0 0.0
  %213 = vmatpush2.msra.mxu0 0.0
  %214 = vmatprep.subr.mxu0 0.0
  %215 = vmatpush2.msra.mxu0 0.0
  %216 = vmatprep.subr.mxu0 0.0
  %217 = vmatpush2.msra.mxu0 0.0
  %218 = vmatprep.subr.mxu0 0.0
  %219 = vmatpush2.msra.mxu0 0.0
  %220 = vmatprep.subr.mxu0 0.0
  %221 = vmatpush2.msra.mxu0 0.0
  %222 = vmatprep.subr.mxu0 0.0
  %223 = vmatpush2.msra.mxu0 0.0
  %224 = vmatprep.subr.mxu0 0.0
  %225 = vmatpush2.msra.mxu0 0.0
  %226 = vmatprep.mubr.f32.mxu0 0.0
  %227 = vmatmul.mubr.f32.gmra.mxu0 %v160
  %v228 = vpop.f32.mrf.mxu0
  %v229 = vadd.f32 0.0, %v228
  %v230 = vpop.f32.mrf.mxu0
  %231 = vdwg.mxu0
  %vm232 = vcmask 293888
  %v234 = vsel %vm232, %v151, 0
  %vm236 = vcmask 1043456
  %v238 = vsel %vm236, %v156, 0
  %240 = vmatprep.subr.mxu0 0.0
  %241 = vmatpush1.msra.mxu0 0.0
  %242 = vmatprep.subr.mxu0 0.0
  %243 = vmatpush1.msra.mxu0 0.0
  %244 = vmatprep.subr.mxu0 0.0
  %245 = vmatpush1.msra.mxu0 0.0
  %246 = vmatprep.subr.mxu0 0.0
  %247 = vmatpush1.msra.mxu0 0.0
  %248 = vmatprep.subr.mxu0 0.0
  %249 = vmatpush1.msra.mxu0 0.0
  %250 = vmatprep.subr.mxu0 0.0
  %251 = vmatpush1.msra.mxu0 0.0
  %252 = vmatprep.subr.mxu0 0.0
  %253 = vmatpush1.msra.mxu0 0.0
  %254 = vmatprep.subr.mxu0 0.0
  %255 = vmatpush1.msra.mxu0 0.0
  %256 = vmatprep.subr.mxu0 0.0
  %257 = vmatpush1.msra.mxu0 0.0
  %258 = vmatprep.subr.mxu0 0.0
  %259 = vmatpush1.msra.mxu0 0.0
  %260 = vmatprep.subr.mxu0 0.0
  %261 = vmatpush1.msra.mxu0 0.0
  %262 = vmatprep.subr.mxu0 0.0
  %263 = vmatpush1.msra.mxu0 %v238
  %264 = vmatprep.subr.mxu0 0.0
  %265 = vmatpush1.msra.mxu0 %v155
  %266 = vmatprep.subr.mxu0 0.0
  %267 = vmatpush1.msra.mxu0 %v154
  %268 = vmatprep.subr.mxu0 0.0
  %269 = vmatpush1.msra.mxu0 %v153
  %270 = vmatprep.subr.mxu0 0.0
  %271 = vmatpush1.msra.mxu0 %v152
  %272 = vmatprep.subr.mxu0 0.0
  %273 = vmatpush2.msra.mxu0 0.0
  %274 = vmatprep.subr.mxu0 0.0
  %275 = vmatpush2.msra.mxu0 0.0
  %276 = vmatprep.subr.mxu0 0.0
  %277 = vmatpush2.msra.mxu0 0.0
  %278 = vmatprep.subr.mxu0 0.0
  %279 = vmatpush2.msra.mxu0 0.0
  %280 = vmatprep.subr.mxu0 0.0
  %281 = vmatpush2.msra.mxu0 0.0
  %282 = vmatprep.subr.mxu0 0.0
  %283 = vmatpush2.msra.mxu0 0.0
  %284 = vmatprep.subr.mxu0 0.0
  %285 = vmatpush2.msra.mxu0 0.0
  %286 = vmatprep.subr.mxu0 0.0
  %287 = vmatpush2.msra.mxu0 0.0
  %288 = vmatprep.subr.mxu0 0.0
  %289 = vmatpush2.msra.mxu0 0.0
  %290 = vmatprep.subr.mxu0 0.0
  %291 = vmatpush2.msra.mxu0 0.0
  %292 = vmatprep.subr.mxu0 0.0
  %293 = vmatpush2.msra.mxu0 0.0
  %294 = vmatprep.subr.mxu0 0.0
  %295 = vmatpush2.msra.mxu0 0.0
  %296 = vmatprep.subr.mxu0 0.0
  %297 = vmatpush2.msra.mxu0 0.0
  %298 = vmatprep.subr.mxu0 0.0
  %299 = vmatpush2.msra.mxu0 0.0
  %300 = vmatprep.subr.mxu0 0.0
  %301 = vmatpush2.msra.mxu0 0.0
  %302 = vmatprep.subr.mxu0 0.0
  %303 = vmatpush2.msra.mxu0 0.0
  %304 = vmatprep.mubr.f32.mxu0 0.0
  %305 = vmatmul.mubr.f32.gmra.mxu0 %v234
  %v306 = vpop.f32.mrf.mxu0
  %v307 = vadd.f32 %v229, %v306
  %v308 = vpop.f32.mrf.mxu0
  %309 = vdwg.mxu0
  %v310 = vld [vmem:[%s6] sm:$0x1]
  %v312 = vlaneseq
  %v313 = vshrl.u32 %v312, 7
  %v314 = vsub.s32 0, %v313
  %v315 = vrot.slane %v310, %v314
  %v317 = vadd.f32 %v307, %v315
  %v318 = vtanh.pop %v317
  %vm319 = vcmask 130048
  %320 = vst.msk [vmem:[%s7] sm:$0xff] %vm319, %v318
  // Predicated region
  $region30: #{closed_call.16} parent=0 // pred_check
    _
  $region31: #{closed_call.16} parent=0 // pred_check_branch
    %322 = sbr.rel (0) target = $region33
  $region32: #{closed_call.16} parent=0 // pred_region
    _
  $region33: #{closed_call.16} parent=0 // pred_fallthru
    _
  // Predicated region
  $region34: #{closed_call.16} parent=0 // pred_check
    _
  $region35: #{closed_call.16} parent=0 // pred_check_branch
    %324 = sbr.rel (0) target = $region37
  $region36: #{closed_call.16} parent=0 // pred_region
    _
  $region37: #{closed_call.16} parent=0 // pred_fallthru
    _

// kernel: closed_call.17
$region0: #{closed_call.17}
  #allocation0 [shape = 'u32[]', space=smem, size = 0x4, offset = 0x4, fixed_abs, tag = 'smem constant byte address 0x4 - core index']
  #allocation1 [shape = 'u32[144,128]{1,0:T(1,128)}', space=vmem, size = 0x12000, scoped, tag = 'internal scratch']
  %s0 = inlined_call_operand.vmem [shape: f32[4,8,1], index: 0, kind: input, shape index: {}]
  %s1 = inlined_call_operand.vmem [shape: f32[4,8,20], index: 1, kind: input, shape index: {}]
  %s2 = inlined_call_operand.vmem [shape: f32[4,8,1], index: 2, kind: input, shape index: {}]
  %s3 = inlined_call_operand.vmem [shape: f32[8,16], index: 3, kind: input, shape index: {}]
  %s4 = inlined_call_operand.vmem [shape: f32[1,8], index: 4, kind: input, shape index: {}]
  %s5 = inlined_call_operand.vmem [shape: f32[1,8], index: 5, kind: input, shape index: {}]
  %s6 = inlined_call_operand.vmem [shape: f32[20,16], index: 6, kind: input, shape index: {}]
  %s7 = inlined_call_operand.vmem [shape: f32[8,16], index: 7, kind: input, shape index: {}]
  %s8 = inlined_call_operand.vmem [shape: f32[1,16], index: 8, kind: input, shape index: {}]
  %s9 = inlined_call_operand.vmem [shape: f32[16,16], index: 9, kind: input, shape index: {}]
  %s10 = inlined_call_operand.vmem [shape: f32[16,16], index: 10, kind: input, shape index: {}]
  %s11 = inlined_call_operand.vmem [shape: f32[1,16], index: 11, kind: input, shape index: {}]
  %s12 = inlined_call_operand.vmem [shape: f32[8,16], index: 12, kind: output, shape index: {}]
  %s13 = sld [smem:[#allocation0]]
  $region58: #{closed_call.17} parent=0
    _
  %s15 = ssub.s32 1, %s13
  %s16 = scalar_select 0, %s15, %s13
  // Predicated region
  $region2: #{closed_call.17} parent=0 // pred_check
    _
  $region3: #{closed_call.17} parent=0 // pred_check_branch
    %18 = sbr.rel (0) target = $region5
  $region4: #{closed_call.17} parent=0 // pred_region
    _
  $region5: #{closed_call.17} parent=0 // pred_fallthru
    _
  // Predicated region
  $region6: #{closed_call.17} parent=0 // pred_check
    _
  $region7: #{closed_call.17} parent=0 // pred_check_branch
    %20 = sbr.rel (0) target = $region9
  $region8: #{closed_call.17} parent=0 // pred_region
    _
  $region9: #{closed_call.17} parent=0 // pred_fallthru
    _
  // Predicated region
  $region10: #{closed_call.17} parent=0 // pred_check
    _
  $region11: #{closed_call.17} parent=0 // pred_check_branch
    %22 = sbr.rel (0) target = $region13
  $region12: #{closed_call.17} parent=0 // pred_region
    _
  $region13: #{closed_call.17} parent=0 // pred_fallthru
    _
  // Predicated region
  $region14: #{closed_call.17} parent=0 // pred_check
    _
  $region15: #{closed_call.17} parent=0 // pred_check_branch
    %24 = sbr.rel (0) target = $region17
  $region16: #{closed_call.17} parent=0 // pred_region
    _
  $region17: #{closed_call.17} parent=0 // pred_fallthru
    _
  // Predicated region
  $region18: #{closed_call.17} parent=0 // pred_check
    _
  $region19: #{closed_call.17} parent=0 // pred_check_branch
    %26 = sbr.rel (0) target = $region21
  $region20: #{closed_call.17} parent=0 // pred_region
    _
  $region21: #{closed_call.17} parent=0 // pred_fallthru
    _
  // Predicated region
  $region22: #{closed_call.17} parent=0 // pred_check
    _
  $region23: #{closed_call.17} parent=0 // pred_check_branch
    %28 = sbr.rel (0) target = $region25
  $region24: #{closed_call.17} parent=0 // pred_region
    _
  $region25: #{closed_call.17} parent=0 // pred_fallthru
    _
  // Predicated region
  $region26: #{closed_call.17} parent=0 // pred_check
    _
  $region27: #{closed_call.17} parent=0 // pred_check_branch
    %30 = sbr.rel (0) target = $region29
  $region28: #{closed_call.17} parent=0 // pred_region
    _
  $region29: #{closed_call.17} parent=0 // pred_fallthru
    _
  // Predicated region
  $region30: #{closed_call.17} parent=0 // pred_check
    _
  $region31: #{closed_call.17} parent=0 // pred_check_branch
    %32 = sbr.rel (0) target = $region33
  $region32: #{closed_call.17} parent=0 // pred_region
    _
  $region33: #{closed_call.17} parent=0 // pred_fallthru
    _
  // Predicated region
  $region34: #{closed_call.17} parent=0 // pred_check
    _
  $region35: #{closed_call.17} parent=0 // pred_check_branch
    %34 = sbr.rel (0) target = $region37
  $region36: #{closed_call.17} parent=0 // pred_region
    _
  $region37: #{closed_call.17} parent=0 // pred_fallthru
    _
  // Predicated region
  $region38: #{closed_call.17} parent=0 // pred_check
    _
  $region39: #{closed_call.17} parent=0 // pred_check_branch
    %36 = sbr.rel (0) target = $region41
  $region40: #{closed_call.17} parent=0 // pred_region
    _
  $region41: #{closed_call.17} parent=0 // pred_fallthru
    _
  // Predicated region
  $region42: #{closed_call.17} parent=0 // pred_check
    _
  $region43: #{closed_call.17} parent=0 // pred_check_branch
    %38 = sbr.rel (0) target = $region45
  $region44: #{closed_call.17} parent=0 // pred_region
    _
  $region45: #{closed_call.17} parent=0 // pred_fallthru
    _
  // Predicated region
  $region46: #{closed_call.17} parent=0 // pred_check
    _
  $region47: #{closed_call.17} parent=0 // pred_check_branch
    %40 = sbr.rel (0) target = $region49
  $region48: #{closed_call.17} parent=0 // pred_region
    _
  $region49: #{closed_call.17} parent=0 // pred_fallthru
    _
  %v41 = vld [vmem:[%s4] sm:$0x1]
  %v43 = vlaneseq
  %v44 = vshrl.u32 %v43, 7
  %v45 = vsub.s32 0, %v44
  %v46 = vrot.slane %v41, %v45
  %v48 = vld [vmem:[%s5] sm:$0x1]
  %v50 = vlaneseq
  %v51 = vshrl.u32 %v50, 7
  %v52 = vsub.s32 0, %v51
  %v53 = vrot.slane %v48, %v52
  %v55 = vld [vmem:[%s2] sm:$0xff]
  %v56 = vld [vmem:[%s1] sm:$0xff]
  %58 = vset.pattern.permute.xlu0 0
  %59 = vperm.xlu0 %58, %v55
  %v60 = vpop.permute.xlu0 %59
  %v62 = vmul.f32 %v56, %v60
  %v63 = vld [vmem:[%s0] sm:$0xff]
  %65 = vset.pattern.permute.xlu0 0
  %66 = vperm.xlu0 %65, %v63
  %v67 = vpop.permute.xlu0 %66
  %v69 = vmul.f32 %v67, %v46
  %v70 = vadd.f32 %v69, %v53
  %v71 = vand.u32 2147483647, %v70
  %vm72 = vcmp.le.f32.partialorder %v71, 0.7853982
  %vm73 = vcmp.lt.s32.totalorder %v70, 0
  %v74 = vand.u32 %v70, 2139095040
  %v75 = vshrl.u32 %v74, 23
  %v76 = vsub.s32 %v75, 127
  %v77 = vand.u32 2147483647, %v70
  %v78 = vand.u32 %v77, 8388607
  %v79 = vor.u32 %v78, 8388608
  %v80 = vsub.s32 0, %v79
  %v81 = vadd.s32 %v76, 1
  %vm82 = vcmp.gt.s32.totalorder %v81, 0
  %v83 = vsel %vm82, %v81, 0
  %v84 = vshrl.u32 %v83, 5
  %v85 = vand.u32 %v83, 31
  %v86 = vsub.s32 32, %v85
  %v87 = vshrl.u32 683565275, %v86
  %v88 = vshll.u32 683565275, %v85
  %v89 = vshrl.u32 2475754826, %v86
  %v90 = vor.u32 %v88, %v89
  %v91 = vshll.u32 2475754826, %v85
  %v92 = vshrl.u32 2131351028, %v86
  %v93 = vor.u32 %v91, %v92
  %v94 = vshll.u32 2131351028, %v85
  %v95 = vshrl.u32 2102212464, %v86
  %v96 = vor.u32 %v94, %v95
  %v97 = vshll.u32 2102212464, %v85
  %v98 = vshrl.u32 920167782, %v86
  %v99 = vor.u32 %v97, %v98
  %v100 = vshll.u32 920167782, %v85
  %v101 = vshrl.u32 1326507024, %v86
  %v102 = vor.u32 %v100, %v101
  %vm103 = vcmp.lt.s32.totalorder %v84, 1
  %vm104 = vcmp.lt.s32.totalorder %v84, 2
  %vm105 = vcmp.lt.s32.totalorder %v84, 3
  %vm106 = vcmp.lt.s32.totalorder %v84, 4
  %v107 = vsel %vm103, %v87, %v90
  %v108 = vsel %vm106, %v96, 2102212464
  %v109 = vsel %vm105, %v93, %v108
  %v110 = vsel %vm104, %v107, %v109
  %v111 = vsel %vm103, %v90, %v93
  %v112 = vsel %vm106, %v99, 920167782
  %v113 = vsel %vm105, %v96, %v112
  %v114 = vsel %vm104, %v111, %v113
  %v115 = vsel %vm103, %v93, %v96
  %v116 = vsel %vm106, %v102, 1326507024
  %v117 = vsel %vm105, %v99, %v116
  %v118 = vsel %vm104, %v115, %v117
  %v119 = vshll.u32 %v79, 8
  %v120 = vmul.u32.u64.compose %v119, %v118
  %v121 = vextract.low.u32 %v120
  %v122 = vextract.high.u32 %v120
  %v123 = vmul.u32.u64.compose %v119, %v114
  %v124 = vextract.low.u32 %v123
  %v125 = vextract.high.u32 %v123
  %v126 = vmul.u32 %v119, %v110
  %v127 = vadd.s32 %v122, %v124
  %vm128 = vc.u32 %v122, %v124
  %v129 = vadd.s32 %v125, 1
  %v130 = vsel %vm128, %v129, %v125
  %v131 = vadd.s32 %v126, %v130
  %v132 = vadd.s32 %v131, 536870912
  %v133 = vshrl.u32 %v132, 30
  %v134 = vshll.u32 %v133, 30
  %v135 = vsub.s32 %v131, %v134
  %vm136 = vcmp.lt.s32.totalorder %v135, 0
  %v137 = vsub.s32 0, %v135
  %v138 = vsel %vm136, %v137, %v135
  %v139 = vclz %v138
  %v140 = vsub.s32 %v139, 2
  %vm141 = vcmp.gt.s32.totalorder 0, %v140
  %v142 = vsel %vm141, 0, %v140
  %v143 = vsub.s32 32, %v142
  %v144 = vshll.u32 %v135, %v142
  %v145 = vshrl.u32 %v127, %v143
  %v146 = vor.u32 %v144, %v145
  %v147 = vsub.s32 4294967266, %v142
  %v148 = vadd.s32 %v147, 127
  %v149 = vshll.u32 %v148, 23
  %v150 = vor.u32 4788187, %v149
  %v151 = vand.u32 2147483647, %v150
  %v153 = vcvt.s32.f32 %v146
  %v154 = vmul.f32 %v153, %v151
  %v155 = vxor.u32 %v154, 2147483648
  %v156 = vsel %vm73, %v155, %v154
  %v157 = vsub.s32 4, %v133
  %v158 = vsel %vm73, %v157, %v133
  %v159 = vsel %vm72, %v70, %v156
  %v160 = vsel %vm72, 0, %v158
  %v161 = vcosq.f32.pop %v159
  %v162 = vsinq.f32.pop %v159
  %vm163 = vweird.f32 %v70
  %v164 = vand.u32 %v160, 3
  %vm165 = vcmp.lt.s32.totalorder %v164, 2
  %vm166 = vcmp.eq.s32.totalorder %v164, 0
  %v167 = vxor.u32 %v162, 2147483648
  %v168 = vsel %vm166, %v161, %v167
  %vm169 = vcmp.eq.s32.totalorder %v164, 2
  %v170 = vxor.u32 %v161, 2147483648
  %v171 = vsel %vm169, %v170, %v162
  %v172 = vsel %vm165, %v168, %v171
  %v173 = vsel %vm163, nan, %v172
  %v174 = vmul.f32 %v173, %v60
  %s175 = scalar_lea.vmem %s2, 8
  %v176 = vld [vmem:[%s175] sm:$0xff]
  %s177 = scalar_lea.vmem %s1, 8
  %v178 = vld [vmem:[%s177] sm:$0xff]
  %180 = vset.pattern.permute.xlu0 0
  %181 = vperm.xlu0 %180, %v176
  %v182 = vpop.permute.xlu0 %181
  %v184 = vmul.f32 %v178, %v182
  %v185 = vadd.f32 %v62, %v184
  %s186 = scalar_lea.vmem %s0, 8
  %v187 = vld [vmem:[%s186] sm:$0xff]
  %189 = vset.pattern.permute.xlu0 0
  %190 = vperm.xlu0 %189, %v187
  %v191 = vpop.permute.xlu0 %190
  %v193 = vmul.f32 %v191, %v46
  %v194 = vadd.f32 %v193, %v53
  %v195 = vand.u32 2147483647, %v194
  %vm196 = vcmp.le.f32.partialorder %v195, 0.7853982
  %vm197 = vcmp.lt.s32.totalorder %v194, 0
  %v198 = vand.u32 %v194, 2139095040
  %v199 = vshrl.u32 %v198, 23
  %v200 = vsub.s32 %v199, 127
  %v201 = vand.u32 2147483647, %v194
  %v202 = vand.u32 %v201, 8388607
  %v203 = vor.u32 %v202, 8388608
  %v204 = vsub.s32 0, %v203
  %v205 = vadd.s32 %v200, 1
  %vm206 = vcmp.gt.s32.totalorder %v205, 0
  %v207 = vsel %vm206, %v205, 0
  %v208 = vshrl.u32 %v207, 5
  %v209 = vand.u32 %v207, 31
  %v210 = vsub.s32 32, %v209
  %v211 = vshrl.u32 683565275, %v210
  %v212 = vshll.u32 683565275, %v209
  %v213 = vshrl.u32 2475754826, %v210
  %v214 = vor.u32 %v212, %v213
  %v215 = vshll.u32 2475754826, %v209
  %v216 = vshrl.u32 2131351028, %v210
  %v217 = vor.u32 %v215, %v216
  %v218 = vshll.u32 2131351028, %v209
  %v219 = vshrl.u32 2102212464, %v210
  %v220 = vor.u32 %v218, %v219
  %v221 = vshll.u32 2102212464, %v209
  %v222 = vshrl.u32 920167782, %v210
  %v223 = vor.u32 %v221, %v222
  %v224 = vshll.u32 920167782, %v209
  %v225 = vshrl.u32 1326507024, %v210
  %v226 = vor.u32 %v224, %v225
  %vm227 = vcmp.lt.s32.totalorder %v208, 1
  %vm228 = vcmp.lt.s32.totalorder %v208, 2
  %vm229 = vcmp.lt.s32.totalorder %v208, 3
  %vm230 = vcmp.lt.s32.totalorder %v208, 4
  %v231 = vsel %vm227, %v211, %v214
  %v232 = vsel %vm230, %v220, 2102212464
  %v233 = vsel %vm229, %v217, %v232
  %v234 = vsel %vm228, %v231, %v233
  %v235 = vsel %vm227, %v214, %v217
  %v236 = vsel %vm230, %v223, 920167782
  %v237 = vsel %vm229, %v220, %v236
  %v238 = vsel %vm228, %v235, %v237
  %v239 = vsel %vm227, %v217, %v220
  %v240 = vsel %vm230, %v226, 1326507024
  %v241 = vsel %vm229, %v223, %v240
  %v242 = vsel %vm228, %v239, %v241
  %v243 = vshll.u32 %v203, 8
  %v244 = vmul.u32.u64.compose %v243, %v242
  %v245 = vextract.low.u32 %v244
  %v246 = vextract.high.u32 %v244
  %v247 = vmul.u32.u64.compose %v243, %v238
  %v248 = vextract.low.u32 %v247
  %v249 = vextract.high.u32 %v247
  %v250 = vmul.u32 %v243, %v234
  %v251 = vadd.s32 %v246, %v248
  %vm252 = vc.u32 %v246, %v248
  %v253 = vadd.s32 %v249, 1
  %v254 = vsel %vm252, %v253, %v249
  %v255 = vadd.s32 %v250, %v254
  %v256 = vadd.s32 %v255, 536870912
  %v257 = vshrl.u32 %v256, 30
  %v258 = vshll.u32 %v257, 30
  %v259 = vsub.s32 %v255, %v258
  %vm260 = vcmp.lt.s32.totalorder %v259, 0
  %v261 = vsub.s32 0, %v259
  %v262 = vsel %vm260, %v261, %v259
  %v263 = vclz %v262
  %v264 = vsub.s32 %v263, 2
  %vm265 = vcmp.gt.s32.totalorder 0, %v264
  %v266 = vsel %vm265, 0, %v264
  %v267 = vsub.s32 32, %v266
  %v268 = vshll.u32 %v259, %v266
  %v269 = vshrl.u32 %v251, %v267
  %v270 = vor.u32 %v268, %v269
  %v271 = vsub.s32 4294967266, %v266
  %v272 = vadd.s32 %v271, 127
  %v273 = vshll.u32 %v272, 23
  %v274 = vor.u32 4788187, %v273
  %v275 = vand.u32 2147483647, %v274
  %v277 = vcvt.s32.f32 %v270
  %v278 = vmul.f32 %v277, %v275
  %v279 = vxor.u32 %v278, 2147483648
  %v280 = vsel %vm197, %v279, %v278
  %v281 = vsub.s32 4, %v257
  %v282 = vsel %vm197, %v281, %v257
  %v283 = vsel %vm196, %v194, %v280
  %v284 = vsel %vm196, 0, %v282
  %v285 = vcosq.f32.pop %v283
  %v286 = vsinq.f32.pop %v283
  %vm287 = vweird.f32 %v194
  %v288 = vand.u32 %v284, 3
  %vm289 = vcmp.lt.s32.totalorder %v288, 2
  %vm290 = vcmp.eq.s32.totalorder %v288, 0
  %v291 = vxor.u32 %v286, 2147483648
  %v292 = vsel %vm290, %v285, %v291
  %vm293 = vcmp.eq.s32.totalorder %v288, 2
  %v294 = vxor.u32 %v285, 2147483648
  %v295 = vsel %vm293, %v294, %v286
  %v296 = vsel %vm289, %v292, %v295
  %v297 = vsel %vm287, nan, %v296
  %v298 = vmul.f32 %v297, %v182
  %v299 = vadd.f32 %v174, %v298
  %v300 = vadd.f32 %v55, %v176
  %s301 = scalar_lea.vmem %s2, 16
  %v302 = vld [vmem:[%s301] sm:$0xff]
  %s303 = scalar_lea.vmem %s1, 16
  %v304 = vld [vmem:[%s303] sm:$0xff]
  %306 = vset.pattern.permute.xlu0 0
  %307 = vperm.xlu0 %306, %v302
  %v308 = vpop.permute.xlu0 %307
  %v310 = vmul.f32 %v304, %v308
  %v311 = vadd.f32 %v185, %v310
  %s312 = scalar_lea.vmem %s0, 16
  %v313 = vld [vmem:[%s312] sm:$0xff]
  %315 = vset.pattern.permute.xlu0 0
  %316 = vperm.xlu0 %315, %v313
  %v317 = vpop.permute.xlu0 %316
  %v319 = vmul.f32 %v317, %v46
  %v320 = vadd.f32 %v319, %v53
  %v321 = vand.u32 2147483647, %v320
  %vm322 = vcmp.le.f32.partialorder %v321, 0.7853982
  %vm323 = vcmp.lt.s32.totalorder %v320, 0
  %v324 = vand.u32 %v320, 2139095040
  %v325 = vshrl.u32 %v324, 23
  %v326 = vsub.s32 %v325, 127
  %v327 = vand.u32 2147483647, %v320
  %v328 = vand.u32 %v327, 8388607
  %v329 = vor.u32 %v328, 8388608
  %v330 = vsub.s32 0, %v329
  %v331 = vadd.s32 %v326, 1
  %vm332 = vcmp.gt.s32.totalorder %v331, 0
  %v333 = vsel %vm332, %v331, 0
  %v334 = vshrl.u32 %v333, 5
  %v335 = vand.u32 %v333, 31
  %v336 = vsub.s32 32, %v335
  %v337 = vshrl.u32 683565275, %v336
  %v338 = vshll.u32 683565275, %v335
  %v339 = vshrl.u32 2475754826, %v336
  %v340 = vor.u32 %v338, %v339
  %v341 = vshll.u32 2475754826, %v335
  %v342 = vshrl.u32 2131351028, %v336
  %v343 = vor.u32 %v341, %v342
  %v344 = vshll.u32 2131351028, %v335
  %v345 = vshrl.u32 2102212464, %v336
  %v346 = vor.u32 %v344, %v345
  %v347 = vshll.u32 2102212464, %v335
  %v348 = vshrl.u32 920167782, %v336
  %v349 = vor.u32 %v347, %v348
  %v350 = vshll.u32 920167782, %v335
  %v351 = vshrl.u32 1326507024, %v336
  %v352 = vor.u32 %v350, %v351
  %vm353 = vcmp.lt.s32.totalorder %v334, 1
  %vm354 = vcmp.lt.s32.totalorder %v334, 2
  %vm355 = vcmp.lt.s32.totalorder %v334, 3
  %vm356 = vcmp.lt.s32.totalorder %v334, 4
  %v357 = vsel %vm353, %v337, %v340
  %v358 = vsel %vm356, %v346, 2102212464
  %v359 = vsel %vm355, %v343, %v358
  %v360 = vsel %vm354, %v357, %v359
  %v361 = vsel %vm353, %v340, %v343
  %v362 = vsel %vm356, %v349, 920167782
  %v363 = vsel %vm355, %v346, %v362
  %v364 = vsel %vm354, %v361, %v363
  %v365 = vsel %vm353, %v343, %v346
  %v366 = vsel %vm356, %v352, 1326507024
  %v367 = vsel %vm355, %v349, %v366
  %v368 = vsel %vm354, %v365, %v367
  %v369 = vshll.u32 %v329, 8
  %v370 = vmul.u32.u64.compose %v369, %v368
  %v371 = vextract.low.u32 %v370
  %v372 = vextract.high.u32 %v370
  %v373 = vmul.u32.u64.compose %v369, %v364
  %v374 = vextract.low.u32 %v373
  %v375 = vextract.high.u32 %v373
  %v376 = vmul.u32 %v369, %v360
  %v377 = vadd.s32 %v372, %v374
  %vm378 = vc.u32 %v372, %v374
  %v379 = vadd.s32 %v375, 1
  %v380 = vsel %vm378, %v379, %v375
  %v381 = vadd.s32 %v376, %v380
  %v382 = vadd.s32 %v381, 536870912
  %v383 = vshrl.u32 %v382, 30
  %v384 = vshll.u32 %v383, 30
  %v385 = vsub.s32 %v381, %v384
  %vm386 = vcmp.lt.s32.totalorder %v385, 0
  %v387 = vsub.s32 0, %v385
  %v388 = vsel %vm386, %v387, %v385
  %v389 = vclz %v388
  %v390 = vsub.s32 %v389, 2
  %vm391 = vcmp.gt.s32.totalorder 0, %v390
  %v392 = vsel %vm391, 0, %v390
  %v393 = vsub.s32 32, %v392
  %v394 = vshll.u32 %v385, %v392
  %v395 = vshrl.u32 %v377, %v393
  %v396 = vor.u32 %v394, %v395
  %v397 = vsub.s32 4294967266, %v392
  %v398 = vadd.s32 %v397, 127
  %v399 = vshll.u32 %v398, 23
  %v400 = vor.u32 4788187, %v399
  %v401 = vand.u32 2147483647, %v400
  %v403 = vcvt.s32.f32 %v396
  %v404 = vmul.f32 %v403, %v401
  %v405 = vxor.u32 %v404, 2147483648
  %v406 = vsel %vm323, %v405, %v404
  %v407 = vsub.s32 4, %v383
  %v408 = vsel %vm323, %v407, %v383
  %v409 = vsel %vm322, %v320, %v406
  %v410 = vsel %vm322, 0, %v408
  %v411 = vcosq.f32.pop %v409
  %v412 = vsinq.f32.pop %v409
  %vm413 = vweird.f32 %v320
  %v414 = vand.u32 %v410, 3
  %vm415 = vcmp.lt.s32.totalorder %v414, 2
  %vm416 = vcmp.eq.s32.totalorder %v414, 0
  %v417 = vxor.u32 %v412, 2147483648
  %v418 = vsel %vm416, %v411, %v417
  %vm419 = vcmp.eq.s32.totalorder %v414, 2
  %v420 = vxor.u32 %v411, 2147483648
  %v421 = vsel %vm419, %v420, %v412
  %v422 = vsel %vm415, %v418, %v421
  %v423 = vsel %vm413, nan, %v422
  %v424 = vmul.f32 %v423, %v308
  %v425 = vadd.f32 %v299, %v424
  %v426 = vadd.f32 %v300, %v302
  %s427 = scalar_lea.vmem %s2, 24
  %v428 = vld [vmem:[%s427] sm:$0xff]
  %s429 = scalar_lea.vmem %s1, 24
  %v430 = vld [vmem:[%s429] sm:$0xff]
  %432 = vset.pattern.permute.xlu0 0
  %433 = vperm.xlu0 %432, %v428
  %v434 = vpop.permute.xlu0 %433
  %v436 = vmul.f32 %v430, %v434
  %v437 = vadd.f32 %v311, %v436
  %s438 = scalar_lea.vmem %s0, 24
  %v439 = vld [vmem:[%s438] sm:$0xff]
  %441 = vset.pattern.permute.xlu0 0
  %442 = vperm.xlu0 %441, %v439
  %v443 = vpop.permute.xlu0 %442
  %v445 = vmul.f32 %v443, %v46
  %v446 = vadd.f32 %v445, %v53
  %v447 = vand.u32 2147483647, %v446
  %vm448 = vcmp.le.f32.partialorder %v447, 0.7853982
  %vm449 = vcmp.lt.s32.totalorder %v446, 0
  %v450 = vand.u32 %v446, 2139095040
  %v451 = vshrl.u32 %v450, 23
  %v452 = vsub.s32 %v451, 127
  %v453 = vand.u32 2147483647, %v446
  %v454 = vand.u32 %v453, 8388607
  %v455 = vor.u32 %v454, 8388608
  %v456 = vsub.s32 0, %v455
  %v457 = vadd.s32 %v452, 1
  %vm458 = vcmp.gt.s32.totalorder %v457, 0
  %v459 = vsel %vm458, %v457, 0
  %v460 = vshrl.u32 %v459, 5
  %v461 = vand.u32 %v459, 31
  %v462 = vsub.s32 32, %v461
  %v463 = vshrl.u32 683565275, %v462
  %v464 = vshll.u32 683565275, %v461
  %v465 = vshrl.u32 2475754826, %v462
  %v466 = vor.u32 %v464, %v465
  %v467 = vshll.u32 2475754826, %v461
  %v468 = vshrl.u32 2131351028, %v462
  %v469 = vor.u32 %v467, %v468
  %v470 = vshll.u32 2131351028, %v461
  %v471 = vshrl.u32 2102212464, %v462
  %v472 = vor.u32 %v470, %v471
  %v473 = vshll.u32 2102212464, %v461
  %v474 = vshrl.u32 920167782, %v462
  %v475 = vor.u32 %v473, %v474
  %v476 = vshll.u32 920167782, %v461
  %v477 = vshrl.u32 1326507024, %v462
  %v478 = vor.u32 %v476, %v477
  %vm479 = vcmp.lt.s32.totalorder %v460, 1
  %vm480 = vcmp.lt.s32.totalorder %v460, 2
  %vm481 = vcmp.lt.s32.totalorder %v460, 3
  %vm482 = vcmp.lt.s32.totalorder %v460, 4
  %v483 = vsel %vm479, %v463, %v466
  %v484 = vsel %vm482, %v472, 2102212464
  %v485 = vsel %vm481, %v469, %v484
  %v486 = vsel %vm480, %v483, %v485
  %v487 = vsel %vm479, %v466, %v469
  %v488 = vsel %vm482, %v475, 920167782
  %v489 = vsel %vm481, %v472, %v488
  %v490 = vsel %vm480, %v487, %v489
  %v491 = vsel %vm479, %v469, %v472
  %v492 = vsel %vm482, %v478, 1326507024
  %v493 = vsel %vm481, %v475, %v492
  %v494 = vsel %vm480, %v491, %v493
  %v495 = vshll.u32 %v455, 8
  %v496 = vmul.u32.u64.compose %v495, %v494
  %v497 = vextract.low.u32 %v496
  %v498 = vextract.high.u32 %v496
  %v499 = vmul.u32.u64.compose %v495, %v490
  %v500 = vextract.low.u32 %v499
  %v501 = vextract.high.u32 %v499
  %v502 = vmul.u32 %v495, %v486
  %v503 = vadd.s32 %v498, %v500
  %vm504 = vc.u32 %v498, %v500
  %v505 = vadd.s32 %v501, 1
  %v506 = vsel %vm504, %v505, %v501
  %v507 = vadd.s32 %v502, %v506
  %v508 = vadd.s32 %v507, 536870912
  %v509 = vshrl.u32 %v508, 30
  %v510 = vshll.u32 %v509, 30
  %v511 = vsub.s32 %v507, %v510
  %vm512 = vcmp.lt.s32.totalorder %v511, 0
  %v513 = vsub.s32 0, %v511
  %v514 = vsel %vm512, %v513, %v511
  %v515 = vclz %v514
  %v516 = vsub.s32 %v515, 2
  %vm517 = vcmp.gt.s32.totalorder 0, %v516
  %v518 = vsel %vm517, 0, %v516
  %v519 = vsub.s32 32, %v518
  %v520 = vshll.u32 %v511, %v518
  %v521 = vshrl.u32 %v503, %v519
  %v522 = vor.u32 %v520, %v521
  %v523 = vsub.s32 4294967266, %v518
  %v524 = vadd.s32 %v523, 127
  %v525 = vshll.u32 %v524, 23
  %v526 = vor.u32 4788187, %v525
  %v527 = vand.u32 2147483647, %v526
  %v529 = vcvt.s32.f32 %v522
  %v530 = vmul.f32 %v529, %v527
  %v531 = vxor.u32 %v530, 2147483648
  %v532 = vsel %vm449, %v531, %v530
  %v533 = vsub.s32 4, %v509
  %v534 = vsel %vm449, %v533, %v509
  %v535 = vsel %vm448, %v446, %v532
  %v536 = vsel %vm448, 0, %v534
  %v537 = vcosq.f32.pop %v535
  %v538 = vsinq.f32.pop %v535
  %vm539 = vweird.f32 %v446
  %v540 = vand.u32 %v536, 3
  %vm541 = vcmp.lt.s32.totalorder %v540, 2
  %vm542 = vcmp.eq.s32.totalorder %v540, 0
  %v543 = vxor.u32 %v538, 2147483648
  %v544 = vsel %vm542, %v537, %v543
  %vm545 = vcmp.eq.s32.totalorder %v540, 2
  %v546 = vxor.u32 %v537, 2147483648
  %v547 = vsel %vm545, %v546, %v538
  %v548 = vsel %vm541, %v544, %v547
  %v549 = vsel %vm539, nan, %v548
  %v550 = vmul.f32 %v549, %v434
  %v551 = vadd.f32 %v425, %v550
  %v552 = vadd.f32 %v426, %v428
  %v553 = vld [vmem:[%s6] sm:$0xff]
  %v554 = vld [vmem:[%s6 + $0x8] sm:$0xff]
  %v555 = vld [vmem:[%s6 + $0x10] sm:$0xf]
  %v556 = vld [vmem:[%s7] sm:$0xff]
  %vm557 = vcmask 64512
  %v559 = vsel %vm557, %v551, 0
  %561 = vmatprep.subr.mxu0 0.0
  %562 = vmatpush1.msra.mxu0 0.0
  %563 = vmatprep.subr.mxu0 0.0
  %564 = vmatpush1.msra.mxu0 0.0
  %565 = vmatprep.subr.mxu0 0.0
  %566 = vmatpush1.msra.mxu0 0.0
  %567 = vmatprep.subr.mxu0 0.0
  %568 = vmatpush1.msra.mxu0 0.0
  %569 = vmatprep.subr.mxu0 0.0
  %570 = vmatpush1.msra.mxu0 0.0
  %571 = vmatprep.subr.mxu0 0.0
  %572 = vmatpush1.msra.mxu0 0.0
  %573 = vmatprep.subr.mxu0 0.0
  %574 = vmatpush1.msra.mxu0 0.0
  %575 = vmatprep.subr.mxu0 0.0
  %576 = vmatpush1.msra.mxu0 0.0
  %577 = vmatprep.subr.mxu0 0.0
  %578 = vmatpush1.msra.mxu0 0.0
  %579 = vmatprep.subr.mxu0 0.0
  %580 = vmatpush1.msra.mxu0 0.0
  %581 = vmatprep.subr.mxu0 0.0
  %582 = vmatpush1.msra.mxu0 0.0
  %583 = vmatprep.subr.mxu0 0.0
  %584 = vmatpush1.msra.mxu0 0.0
  %585 = vmatprep.subr.mxu0 0.0
  %586 = vmatpush1.msra.mxu0 0.0
  %587 = vmatprep.subr.mxu0 0.0
  %588 = vmatpush1.msra.mxu0 0.0
  %589 = vmatprep.subr.mxu0 0.0
  %590 = vmatpush1.msra.mxu0 0.0
  %591 = vmatprep.subr.mxu0 0.0
  %592 = vmatpush1.msra.mxu0 %v556
  %593 = vmatprep.subr.mxu0 0.0
  %594 = vmatpush2.msra.mxu0 0.0
  %595 = vmatprep.subr.mxu0 0.0
  %596 = vmatpush2.msra.mxu0 0.0
  %597 = vmatprep.subr.mxu0 0.0
  %598 = vmatpush2.msra.mxu0 0.0
  %599 = vmatprep.subr.mxu0 0.0
  %600 = vmatpush2.msra.mxu0 0.0
  %601 = vmatprep.subr.mxu0 0.0
  %602 = vmatpush2.msra.mxu0 0.0
  %603 = vmatprep.subr.mxu0 0.0
  %604 = vmatpush2.msra.mxu0 0.0
  %605 = vmatprep.subr.mxu0 0.0
  %606 = vmatpush2.msra.mxu0 0.0
  %607 = vmatprep.subr.mxu0 0.0
  %608 = vmatpush2.msra.mxu0 0.0
  %609 = vmatprep.subr.mxu0 0.0
  %610 = vmatpush2.msra.mxu0 0.0
  %611 = vmatprep.subr.mxu0 0.0
  %612 = vmatpush2.msra.mxu0 0.0
  %613 = vmatprep.subr.mxu0 0.0
  %614 = vmatpush2.msra.mxu0 0.0
  %615 = vmatprep.subr.mxu0 0.0
  %616 = vmatpush2.msra.mxu0 0.0
  %617 = vmatprep.subr.mxu0 0.0
  %618 = vmatpush2.msra.mxu0 0.0
  %619 = vmatprep.subr.mxu0 0.0
  %620 = vmatpush2.msra.mxu0 0.0
  %621 = vmatprep.subr.mxu0 0.0
  %622 = vmatpush2.msra.mxu0 0.0
  %623 = vmatprep.subr.mxu0 0.0
  %624 = vmatpush2.msra.mxu0 0.0
  %625 = vmatprep.mubr.f32.mxu0 0.0
  %626 = vmatmul.mubr.f32.gmra.mxu0 %v559
  %v627 = vpop.f32.mrf.mxu0
  %v628 = vadd.f32 0.0, %v627
  %v629 = vpop.f32.mrf.mxu0
  %630 = vdwg.mxu0
  %vm631 = vcmask 162816
  %v633 = vsel %vm631, %v437, 0
  %vm635 = vcmask 1043456
  %v637 = vsel %vm635, %v555, 0
  %639 = vmatprep.subr.mxu0 0.0
  %640 = vmatpush1.msra.mxu0 0.0
  %641 = vmatprep.subr.mxu0 0.0
  %642 = vmatpush1.msra.mxu0 0.0
  %643 = vmatprep.subr.mxu0 0.0
  %644 = vmatpush1.msra.mxu0 0.0
  %645 = vmatprep.subr.mxu0 0.0
  %646 = vmatpush1.msra.mxu0 0.0
  %647 = vmatprep.subr.mxu0 0.0
  %648 = vmatpush1.msra.mxu0 0.0
  %649 = vmatprep.subr.mxu0 0.0
  %650 = vmatpush1.msra.mxu0 0.0
  %651 = vmatprep.subr.mxu0 0.0
  %652 = vmatpush1.msra.mxu0 0.0
  %653 = vmatprep.subr.mxu0 0.0
  %654 = vmatpush1.msra.mxu0 0.0
  %655 = vmatprep.subr.mxu0 0.0
  %656 = vmatpush1.msra.mxu0 0.0
  %657 = vmatprep.subr.mxu0 0.0
  %658 = vmatpush1.msra.mxu0 0.0
  %659 = vmatprep.subr.mxu0 0.0
  %660 = vmatpush1.msra.mxu0 0.0
  %661 = vmatprep.subr.mxu0 0.0
  %662 = vmatpush1.msra.mxu0 0.0
  %663 = vmatprep.subr.mxu0 0.0
  %664 = vmatpush1.msra.mxu0 0.0
  %665 = vmatprep.subr.mxu0 0.0
  %666 = vmatpush1.msra.mxu0 %v637
  %667 = vmatprep.subr.mxu0 0.0
  %668 = vmatpush1.msra.mxu0 %v554
  %669 = vmatprep.subr.mxu0 0.0
  %670 = vmatpush1.msra.mxu0 %v553
  %671 = vmatprep.subr.mxu0 0.0
  %672 = vmatpush2.msra.mxu0 0.0
  %673 = vmatprep.subr.mxu0 0.0
  %674 = vmatpush2.msra.mxu0 0.0
  %675 = vmatprep.subr.mxu0 0.0
  %676 = vmatpush2.msra.mxu0 0.0
  %677 = vmatprep.subr.mxu0 0.0
  %678 = vmatpush2.msra.mxu0 0.0
  %679 = vmatprep.subr.mxu0 0.0
  %680 = vmatpush2.msra.mxu0 0.0
  %681 = vmatprep.subr.mxu0 0.0
  %682 = vmatpush2.msra.mxu0 0.0
  %683 = vmatprep.subr.mxu0 0.0
  %684 = vmatpush2.msra.mxu0 0.0
  %685 = vmatprep.subr.mxu0 0.0
  %686 = vmatpush2.msra.mxu0 0.0
  %687 = vmatprep.subr.mxu0 0.0
  %688 = vmatpush2.msra.mxu0 0.0
  %689 = vmatprep.subr.mxu0 0.0
  %690 = vmatpush2.msra.mxu0 0.0
  %691 = vmatprep.subr.mxu0 0.0
  %692 = vmatpush2.msra.mxu0 0.0
  %693 = vmatprep.subr.mxu0 0.0
  %694 = vmatpush2.msra.mxu0 0.0
  %695 = vmatprep.subr.mxu0 0.0
  %696 = vmatpush2.msra.mxu0 0.0
  %697 = vmatprep.subr.mxu0 0.0
  %698 = vmatpush2.msra.mxu0 0.0
  %699 = vmatprep.subr.mxu0 0.0
  %700 = vmatpush2.msra.mxu0 0.0
  %701 = vmatprep.subr.mxu0 0.0
  %702 = vmatpush2.msra.mxu0 0.0
  %703 = vmatprep.mubr.f32.mxu0 0.0
  %704 = vmatmul.mubr.f32.gmra.mxu0 %v633
  %v705 = vpop.f32.mrf.mxu0
  %v706 = vadd.f32 %v628, %v705
  %v707 = vpop.f32.mrf.mxu0
  %708 = vdwg.mxu0
  %v709 = vld [vmem:[%s8] sm:$0x1]
  %711 = vset.pattern.permute.xlu0 0
  %712 = vperm.xlu0 %711, %v552
  %v713 = vpop.permute.xlu0 %712
  %v716 = vlaneseq
  %v717 = vshrl.u32 %v716, 7
  %v718 = vsub.s32 0, %v717
  %v719 = vrot.slane %v709, %v718
  %v721 = vmul.f32 %v713, %v719
  %v722 = vadd.f32 %v706, %v721
  %v723 = vmax.f32 %v722, 0.0
  %v724 = vld [vmem:[%s9] sm:$0xff]
  %v725 = vld [vmem:[%s9 + $0x8] sm:$0xff]
  %v726 = vld [vmem:[%s3] sm:$0xff]
  %v727 = vld [vmem:[%s10] sm:$0xff]
  %v728 = vld [vmem:[%s10 + $0x8] sm:$0xff]
  %vm729 = vcmask 130048
  %v731 = vsel %vm729, %v726, 0
  %733 = vmatprep.subr.mxu0 0.0
  %734 = vmatpush1.msra.mxu0 0.0
  %735 = vmatprep.subr.mxu0 0.0
  %736 = vmatpush1.msra.mxu0 0.0
  %737 = vmatprep.subr.mxu0 0.0
  %738 = vmatpush1.msra.mxu0 0.0
  %739 = vmatprep.subr.mxu0 0.0
  %740 = vmatpush1.msra.mxu0 0.0
  %741 = vmatprep.subr.mxu0 0.0
  %742 = vmatpush1.msra.mxu0 0.0
  %743 = vmatprep.subr.mxu0 0.0
  %744 = vmatpush1.msra.mxu0 0.0
  %745 = vmatprep.subr.mxu0 0.0
  %746 = vmatpush1.msra.mxu0 0.0
  %747 = vmatprep.subr.mxu0 0.0
  %748 = vmatpush1.msra.mxu0 0.0
  %749 = vmatprep.subr.mxu0 0.0
  %750 = vmatpush1.msra.mxu0 0.0
  %751 = vmatprep.subr.mxu0 0.0
  %752 = vmatpush1.msra.mxu0 0.0
  %753 = vmatprep.subr.mxu0 0.0
  %754 = vmatpush1.msra.mxu0 0.0
  %755 = vmatprep.subr.mxu0 0.0
  %756 = vmatpush1.msra.mxu0 0.0
  %757 = vmatprep.subr.mxu0 0.0
  %758 = vmatpush1.msra.mxu0 0.0
  %759 = vmatprep.subr.mxu0 0.0
  %760 = vmatpush1.msra.mxu0 0.0
  %761 = vmatprep.subr.mxu0 0.0
  %762 = vmatpush1.msra.mxu0 %v728
  %763 = vmatprep.subr.mxu0 0.0
  %764 = vmatpush1.msra.mxu0 %v727
  %765 = vmatprep.subr.mxu0 0.0
  %766 = vmatpush2.msra.mxu0 0.0
  %767 = vmatprep.subr.mxu0 0.0
  %768 = vmatpush2.msra.mxu0 0.0
  %769 = vmatprep.subr.mxu0 0.0
  %770 = vmatpush2.msra.mxu0 0.0
  %771 = vmatprep.subr.mxu0 0.0
  %772 = vmatpush2.msra.mxu0 0.0
  %773 = vmatprep.subr.mxu0 0.0
  %774 = vmatpush2.msra.mxu0 0.0
  %775 = vmatprep.subr.mxu0 0.0
  %776 = vmatpush2.msra.mxu0 0.0
  %777 = vmatprep.subr.mxu0 0.0
  %778 = vmatpush2.msra.mxu0 0.0
  %779 = vmatprep.subr.mxu0 0.0
  %780 = vmatpush2.msra.mxu0 0.0
  %781 = vmatprep.subr.mxu0 0.0
  %782 = vmatpush2.msra.mxu0 0.0
  %783 = vmatprep.subr.mxu0 0.0
  %784 = vmatpush2.msra.mxu0 0.0
  %785 = vmatprep.subr.mxu0 0.0
  %786 = vmatpush2.msra.mxu0 0.0
  %787 = vmatprep.subr.mxu0 0.0
  %788 = vmatpush2.msra.mxu0 0.0
  %789 = vmatprep.subr.mxu0 0.0
  %790 = vmatpush2.msra.mxu0 0.0
  %791 = vmatprep.subr.mxu0 0.0
  %792 = vmatpush2.msra.mxu0 0.0
  %793 = vmatprep.subr.mxu0 0.0
  %794 = vmatpush2.msra.mxu0 0.0
  %795 = vmatprep.subr.mxu0 0.0
  %796 = vmatpush2.msra.mxu0 0.0
  %797 = vmatprep.mubr.f32.mxu0 0.0
  %798 = vmatmul.mubr.f32.gmra.mxu0 %v731
  %v799 = vpop.f32.mrf.mxu0
  %v800 = vadd.f32 0.0, %v799
  %v801 = vpop.f32.mrf.mxu0
  %802 = vdwg.mxu0
  %v804 = vsel %vm729, %v723, 0
  %806 = vmatprep.subr.mxu0 0.0
  %807 = vmatpush1.msra.mxu0 0.0
  %808 = vmatprep.subr.mxu0 0.0
  %809 = vmatpush1.msra.mxu0 0.0
  %810 = vmatprep.subr.mxu0 0.0
  %811 = vmatpush1.msra.mxu0 0.0
  %812 = vmatprep.subr.mxu0 0.0
  %813 = vmatpush1.msra.mxu0 0.0
  %814 = vmatprep.subr.mxu0 0.0
  %815 = vmatpush1.msra.mxu0 0.0
  %816 = vmatprep.subr.mxu0 0.0
  %817 = vmatpush1.msra.mxu0 0.0
  %818 = vmatprep.subr.mxu0 0.0
  %819 = vmatpush1.msra.mxu0 0.0
  %820 = vmatprep.subr.mxu0 0.0
  %821 = vmatpush1.msra.mxu0 0.0
  %822 = vmatprep.subr.mxu0 0.0
  %823 = vmatpush1.msra.mxu0 0.0
  %824 = vmatprep.subr.mxu0 0.0
  %825 = vmatpush1.msra.mxu0 0.0
  %826 = vmatprep.subr.mxu0 0.0
  %827 = vmatpush1.msra.mxu0 0.0
  %828 = vmatprep.subr.mxu0 0.0
  %829 = vmatpush1.msra.mxu0 0.0
  %830 = vmatprep.subr.mxu0 0.0
  %831 = vmatpush1.msra.mxu0 0.0
  %832 = vmatprep.subr.mxu0 0.0
  %833 = vmatpush1.msra.mxu0 0.0
  %834 = vmatprep.subr.mxu0 0.0
  %835 = vmatpush1.msra.mxu0 %v725
  %836 = vmatprep.subr.mxu0 0.0
  %837 = vmatpush1.msra.mxu0 %v724
  %838 = vmatprep.subr.mxu0 0.0
  %839 = vmatpush2.msra.mxu0 0.0
  %840 = vmatprep.subr.mxu0 0.0
  %841 = vmatpush2.msra.mxu0 0.0
  %842 = vmatprep.subr.mxu0 0.0
  %843 = vmatpush2.msra.mxu0 0.0
  %844 = vmatprep.subr.mxu0 0.0
  %845 = vmatpush2.msra.mxu0 0.0
  %846 = vmatprep.subr.mxu0 0.0
  %847 = vmatpush2.msra.mxu0 0.0
  %848 = vmatprep.subr.mxu0 0.0
  %849 = vmatpush2.msra.mxu0 0.0
  %850 = vmatprep.subr.mxu0 0.0
  %851 = vmatpush2.msra.mxu0 0.0
  %852 = vmatprep.subr.mxu0 0.0
  %853 = vmatpush2.msra.mxu0 0.0
  %854 = vmatprep.subr.mxu0 0.0
  %855 = vmatpush2.msra.mxu0 0.0
  %856 = vmatprep.subr.mxu0 0.0
  %857 = vmatpush2.msra.mxu0 0.0
  %858 = vmatprep.subr.mxu0 0.0
  %859 = vmatpush2.msra.mxu0 0.0
  %860 = vmatprep.subr.mxu0 0.0
  %861 = vmatpush2.msra.mxu0 0.0
  %862 = vmatprep.subr.mxu0 0.0
  %863 = vmatpush2.msra.mxu0 0.0
  %864 = vmatprep.subr.mxu0 0.0
  %865 = vmatpush2.msra.mxu0 0.0
  %866 = vmatprep.subr.mxu0 0.0
  %867 = vmatpush2.msra.mxu0 0.0
  %868 = vmatprep.subr.mxu0 0.0
  %869 = vmatpush2.msra.mxu0 0.0
  %870 = vmatprep.mubr.f32.mxu0 0.0
  %871 = vmatmul.mubr.f32.gmra.mxu0 %v804
  %v872 = vpop.f32.mrf.mxu0
  %v873 = vadd.f32 %v800, %v872
  %v874 = vpop.f32.mrf.mxu0
  %875 = vdwg.mxu0
  %v876 = vld [vmem:[%s11] sm:$0x1]
  %v878 = vlaneseq
  %v879 = vshrl.u32 %v878, 7
  %v880 = vsub.s32 0, %v879
  %v881 = vrot.slane %v876, %v880
  %v883 = vadd.f32 %v873, %v881
  %884 = vst.msk [vmem:[%s12] sm:$0xff] %vm729, %v883
  // Predicated region
  $region50: #{closed_call.17} parent=0 // pred_check
    _
  $region51: #{closed_call.17} parent=0 // pred_check_branch
    %886 = sbr.rel (0) target = $region53
  $region52: #{closed_call.17} parent=0 // pred_region
    _
  $region53: #{closed_call.17} parent=0 // pred_fallthru
    _
  // Predicated region
  $region54: #{closed_call.17} parent=0 // pred_check
    _
  $region55: #{closed_call.17} parent=0 // pred_check_branch
    %888 = sbr.rel (0) target = $region57
  $region56: #{closed_call.17} parent=0 // pred_region
    _
  $region57: #{closed_call.17} parent=0 // pred_fallthru
    _

// kernel: _forward_device.1
$region0: #{_forward_device.1}
  #allocation0 [shape = 'u32[]', space=smem, size = 0x4, offset = 0x4, fixed_abs, tag = 'smem constant byte address 0x4 - core index']
  #allocation1 [shape = 'u32[144,128]{1,0:T(1,128)}', space=vmem, size = 0x12000, scoped, tag = 'internal scratch']
  #allocation2 [shape = 'f32[1,1]{1,0:T(1,128)S(1)}', space=vmem, size = 0x200, scoped, tag = 'scoped memory for _forward_device.1']
  %s0 = inlined_call_operand.vmem [shape: f32[8,16], index: 0, kind: input, shape index: {}]
  %s1 = inlined_call_operand.vmem [shape: f32[16,32], index: 1, kind: input, shape index: {}]
  %s2 = inlined_call_operand.vmem [shape: f32[1,32], index: 2, kind: input, shape index: {}]
  %s3 = inlined_call_operand.vmem [shape: f32[32,10], index: 3, kind: input, shape index: {}]
  %s4 = inlined_call_operand.vmem [shape: f32[1,10], index: 4, kind: input, shape index: {}]
  %s5 = inlined_call_operand.vmem [shape: f32[1,10], index: 5, kind: input, shape index: {}]
  %s6 = inlined_call_operand.<no memory space> [shape: f32[1,1], index: 6, kind: input, shape index: {}]
  %s7 = inlined_call_operand.vmem [shape: f32[8,1], index: 7, kind: output, shape index: {}]
  %s8 = sld [smem:[#allocation0]]
  $region38: #{_forward_device.1} parent=0
    _
  %s10 = ssub.s32 1, %s8
  %s11 = scalar_select 0, %s10, %s8
  %v12 = vstv %s6
  %13 = vst [vmem:[#allocation2] sm:$0x1] %v12
  // Predicated region
  $region2: #{_forward_device.1} parent=0 // pred_check
    _
  $region3: #{_forward_device.1} parent=0 // pred_check_branch
    %15 = sbr.rel (0) target = $region5
  $region4: #{_forward_device.1} parent=0 // pred_region
    _
  $region5: #{_forward_device.1} parent=0 // pred_fallthru
    _
  // Predicated region
  $region6: #{_forward_device.1} parent=0 // pred_check
    _
  $region7: #{_forward_device.1} parent=0 // pred_check_branch
    %17 = sbr.rel (0) target = $region9
  $region8: #{_forward_device.1} parent=0 // pred_region
    _
  $region9: #{_forward_device.1} parent=0 // pred_fallthru
    _
  // Predicated region
  $region10: #{_forward_device.1} parent=0 // pred_check
    _
  $region11: #{_forward_device.1} parent=0 // pred_check_branch
    %19 = sbr.rel (0) target = $region13
  $region12: #{_forward_device.1} parent=0 // pred_region
    _
  $region13: #{_forward_device.1} parent=0 // pred_fallthru
    _
  // Predicated region
  $region14: #{_forward_device.1} parent=0 // pred_check
    _
  $region15: #{_forward_device.1} parent=0 // pred_check_branch
    %21 = sbr.rel (0) target = $region17
  $region16: #{_forward_device.1} parent=0 // pred_region
    _
  $region17: #{_forward_device.1} parent=0 // pred_fallthru
    _
  // Predicated region
  $region18: #{_forward_device.1} parent=0 // pred_check
    _
  $region19: #{_forward_device.1} parent=0 // pred_check_branch
    %23 = sbr.rel (0) target = $region21
  $region20: #{_forward_device.1} parent=0 // pred_region
    _
  $region21: #{_forward_device.1} parent=0 // pred_fallthru
    _
  // Predicated region
  $region22: #{_forward_device.1} parent=0 // pred_check
    _
  $region23: #{_forward_device.1} parent=0 // pred_check_branch
    %25 = sbr.rel (0) target = $region25
  $region24: #{_forward_device.1} parent=0 // pred_region
    _
  $region25: #{_forward_device.1} parent=0 // pred_fallthru
    _
  // Predicated region
  $region26: #{_forward_device.1} parent=0 // pred_check
    _
  $region27: #{_forward_device.1} parent=0 // pred_check_branch
    %27 = sbr.rel (0) target = $region29
  $region28: #{_forward_device.1} parent=0 // pred_region
    _
  $region29: #{_forward_device.1} parent=0 // pred_fallthru
    _
  %v28 = vld [vmem:[%s0] sm:$0xff]
  %v29 = vld [vmem:[%s1] sm:$0xff]
  %v30 = vld [vmem:[%s1 + $0x8] sm:$0xff]
  %v31 = vld [vmem:[%s2] sm:$0x1]
  %v33 = vlaneseq
  %v34 = vshrl.u32 %v33, 7
  %v35 = vsub.s32 0, %v34
  %v36 = vrot.slane %v31, %v35
  %vm38 = vcmask 130048
  %v40 = vsel %vm38, %v28, 0
  %42 = vmatprep.subr.mxu0 0.0
  %43 = vmatpush1.msra.mxu0 0.0
  %44 = vmatprep.subr.mxu0 0.0
  %45 = vmatpush1.msra.mxu0 0.0
  %46 = vmatprep.subr.mxu0 0.0
  %47 = vmatpush1.msra.mxu0 0.0
  %48 = vmatprep.subr.mxu0 0.0
  %49 = vmatpush1.msra.mxu0 0.0
  %50 = vmatprep.subr.mxu0 0.0
  %51 = vmatpush1.msra.mxu0 0.0
  %52 = vmatprep.subr.mxu0 0.0
  %53 = vmatpush1.msra.mxu0 0.0
  %54 = vmatprep.subr.mxu0 0.0
  %55 = vmatpush1.msra.mxu0 0.0
  %56 = vmatprep.subr.mxu0 0.0
  %57 = vmatpush1.msra.mxu0 0.0
  %58 = vmatprep.subr.mxu0 0.0
  %59 = vmatpush1.msra.mxu0 0.0
  %60 = vmatprep.subr.mxu0 0.0
  %61 = vmatpush1.msra.mxu0 0.0
  %62 = vmatprep.subr.mxu0 0.0
  %63 = vmatpush1.msra.mxu0 0.0
  %64 = vmatprep.subr.mxu0 0.0
  %65 = vmatpush1.msra.mxu0 0.0
  %66 = vmatprep.subr.mxu0 0.0
  %67 = vmatpush1.msra.mxu0 0.0
  %68 = vmatprep.subr.mxu0 0.0
  %69 = vmatpush1.msra.mxu0 0.0
  %70 = vmatprep.subr.mxu0 0.0
  %71 = vmatpush1.msra.mxu0 %v30
  %72 = vmatprep.subr.mxu0 0.0
  %73 = vmatpush1.msra.mxu0 %v29
  %74 = vmatprep.subr.mxu0 0.0
  %75 = vmatpush2.msra.mxu0 0.0
  %76 = vmatprep.subr.mxu0 0.0
  %77 = vmatpush2.msra.mxu0 0.0
  %78 = vmatprep.subr.mxu0 0.0
  %79 = vmatpush2.msra.mxu0 0.0
  %80 = vmatprep.subr.mxu0 0.0
  %81 = vmatpush2.msra.mxu0 0.0
  %82 = vmatprep.subr.mxu0 0.0
  %83 = vmatpush2.msra.mxu0 0.0
  %84 = vmatprep.subr.mxu0 0.0
  %85 = vmatpush2.msra.mxu0 0.0
  %86 = vmatprep.subr.mxu0 0.0
  %87 = vmatpush2.msra.mxu0 0.0
  %88 = vmatprep.subr.mxu0 0.0
  %89 = vmatpush2.msra.mxu0 0.0
  %90 = vmatprep.subr.mxu0 0.0
  %91 = vmatpush2.msra.mxu0 0.0
  %92 = vmatprep.subr.mxu0 0.0
  %93 = vmatpush2.msra.mxu0 0.0
  %94 = vmatprep.subr.mxu0 0.0
  %95 = vmatpush2.msra.mxu0 0.0
  %96 = vmatprep.subr.mxu0 0.0
  %97 = vmatpush2.msra.mxu0 0.0
  %98 = vmatprep.subr.mxu0 0.0
  %99 = vmatpush2.msra.mxu0 0.0
  %100 = vmatprep.subr.mxu0 0.0
  %101 = vmatpush2.msra.mxu0 0.0
  %102 = vmatprep.subr.mxu0 0.0
  %103 = vmatpush2.msra.mxu0 0.0
  %104 = vmatprep.subr.mxu0 0.0
  %105 = vmatpush2.msra.mxu0 0.0
  %106 = vmatprep.mubr.f32.mxu0 0.0
  %107 = vmatmul.mubr.f32.gmra.mxu0 %v40
  %v108 = vpop.f32.mrf.mxu0
  %v109 = vadd.f32 %v36, %v108
  %v110 = vpop.f32.mrf.mxu0
  %111 = vdwg.mxu0
  %v112 = vmax.f32 %v109, 0.0
  %v113 = vld [vmem:[%s3] sm:$0xff]
  %v114 = vld [vmem:[%s3 + $0x8] sm:$0xff]
  %v115 = vld [vmem:[%s3 + $0x10] sm:$0xff]
  %v116 = vld [vmem:[%s3 + $0x18] sm:$0xff]
  %v117 = vld [vmem:[%s4] sm:$0x1]
  %v119 = vlaneseq
  %v120 = vshrl.u32 %v119, 7
  %v121 = vsub.s32 0, %v120
  %v122 = vrot.slane %v117, %v121
  %vm124 = vcmask 261120
  %v126 = vsel %vm124, %v112, 0
  %128 = vmatprep.subr.mxu0 0.0
  %129 = vmatpush1.msra.mxu0 0.0
  %130 = vmatprep.subr.mxu0 0.0
  %131 = vmatpush1.msra.mxu0 0.0
  %132 = vmatprep.subr.mxu0 0.0
  %133 = vmatpush1.msra.mxu0 0.0
  %134 = vmatprep.subr.mxu0 0.0
  %135 = vmatpush1.msra.mxu0 0.0
  %136 = vmatprep.subr.mxu0 0.0
  %137 = vmatpush1.msra.mxu0 0.0
  %138 = vmatprep.subr.mxu0 0.0
  %139 = vmatpush1.msra.mxu0 0.0
  %140 = vmatprep.subr.mxu0 0.0
  %141 = vmatpush1.msra.mxu0 0.0
  %142 = vmatprep.subr.mxu0 0.0
  %143 = vmatpush1.msra.mxu0 0.0
  %144 = vmatprep.subr.mxu0 0.0
  %145 = vmatpush1.msra.mxu0 0.0
  %146 = vmatprep.subr.mxu0 0.0
  %147 = vmatpush1.msra.mxu0 0.0
  %148 = vmatprep.subr.mxu0 0.0
  %149 = vmatpush1.msra.mxu0 0.0
  %150 = vmatprep.subr.mxu0 0.0
  %151 = vmatpush1.msra.mxu0 0.0
  %152 = vmatprep.subr.mxu0 0.0
  %153 = vmatpush1.msra.mxu0 %v116
  %154 = vmatprep.subr.mxu0 0.0
  %155 = vmatpush1.msra.mxu0 %v115
  %156 = vmatprep.subr.mxu0 0.0
  %157 = vmatpush1.msra.mxu0 %v114
  %158 = vmatprep.subr.mxu0 0.0
  %159 = vmatpush1.msra.mxu0 %v113
  %160 = vmatprep.subr.mxu0 0.0
  %161 = vmatpush2.msra.mxu0 0.0
  %162 = vmatprep.subr.mxu0 0.0
  %163 = vmatpush2.msra.mxu0 0.0
  %164 = vmatprep.subr.mxu0 0.0
  %165 = vmatpush2.msra.mxu0 0.0
  %166 = vmatprep.subr.mxu0 0.0
  %167 = vmatpush2.msra.mxu0 0.0
  %168 = vmatprep.subr.mxu0 0.0
  %169 = vmatpush2.msra.mxu0 0.0
  %170 = vmatprep.subr.mxu0 0.0
  %171 = vmatpush2.msra.mxu0 0.0
  %172 = vmatprep.subr.mxu0 0.0
  %173 = vmatpush2.msra.mxu0 0.0
  %174 = vmatprep.subr.mxu0 0.0
  %175 = vmatpush2.msra.mxu0 0.0
  %176 = vmatprep.subr.mxu0 0.0
  %177 = vmatpush2.msra.mxu0 0.0
  %178 = vmatprep.subr.mxu0 0.0
  %179 = vmatpush2.msra.mxu0 0.0
  %180 = vmatprep.subr.mxu0 0.0
  %181 = vmatpush2.msra.mxu0 0.0
  %182 = vmatprep.subr.mxu0 0.0
  %183 = vmatpush2.msra.mxu0 0.0
  %184 = vmatprep.subr.mxu0 0.0
  %185 = vmatpush2.msra.mxu0 0.0
  %186 = vmatprep.subr.mxu0 0.0
  %187 = vmatpush2.msra.mxu0 0.0
  %188 = vmatprep.subr.mxu0 0.0
  %189 = vmatpush2.msra.mxu0 0.0
  %190 = vmatprep.subr.mxu0 0.0
  %191 = vmatpush2.msra.mxu0 0.0
  %192 = vmatprep.mubr.f32.mxu0 0.0
  %193 = vmatmul.mubr.f32.gmra.mxu0 %v126
  %v194 = vpop.f32.mrf.mxu0
  %v195 = vadd.f32 %v122, %v194
  %v196 = vpop.f32.mrf.mxu0
  %197 = vdwg.mxu0
  %v198 = vmax.f32 %v195, 0.0
  %v199 = vld [vmem:[%s5] sm:$0x1]
  %v201 = vlaneseq
  %v202 = vshrl.u32 %v201, 7
  %v203 = vsub.s32 0, %v202
  %v204 = vrot.slane %v199, %v203
  %v206 = vmul.f32 %v198, %v204
  %vm207 = vcmask 80896
  %v208 = vsel %vm207, %v206, 0.0
  %209 = vadd.xlane.f32.xlu0 %v208
  %v210 = vpop.xlane.xlu0 %209
  %v211 = vld [vmem:[#allocation2] sm:$0x1]
  %v213 = vlaneseq
  %v214 = vshrl.u32 %v213, 7
  %v215 = vsub.s32 0, %v214
  %v216 = vrot.slane %v211, %v215
  %v218 = vadd.f32 %v210, %v216
  %v219 = vmul.f32 %v218, 0.5
  %v220 = vtanh.pop %v219
  %v221 = vadd.f32 %v220, 1.0
  %v222 = vmul.f32 %v221, 0.5
  %vm223 = vcmask 7168
  %224 = vst.msk [vmem:[%s7] sm:$0xff] %vm223, %v222
  // Predicated region
  $region30: #{_forward_device.1} parent=0 // pred_check
    _
  $region31: #{_forward_device.1} parent=0 // pred_check_branch
    %226 = sbr.rel (0) target = $region33
  $region32: #{_forward_device.1} parent=0 // pred_region
    _
  $region33: #{_forward_device.1} parent=0 // pred_fallthru
    _
  // Predicated region
  $region34: #{_forward_device.1} parent=0 // pred_check
    _
  $region35: #{_forward_device.1} parent=0 // pred_check_branch
    %228 = sbr.rel (0) target = $region37
  $region36: #{_forward_device.1} parent=0 // pred_region
    _
  $region37: #{_forward_device.1} parent=0 // pred_fallthru
    _

</llo_original>
